<compile_context>
chip_gen: v6e
topology: v6e:2x2x1
jax: 0.10.0
libtpu: 0.0.40
codegen_flags: <defaults>
</compile_context>

<pallas_src>
import functools

import jax
import jax.numpy as jnp
from jax.experimental import pallas as pl
from jax.experimental.pallas import tpu as pltpu

F32 = jnp.float32
EPS = 1e-15
SELU_ALPHA = 1.6732632423543772
SELU_SCALE = 1.0507009873554805
LANES = 128


def _ceil8(n):
    return -(-n // 8) * 8


def _eye(n, dtype=F32):
    r = jax.lax.broadcasted_iota(jnp.int32, (n, n), 0)
    c = jax.lax.broadcasted_iota(jnp.int32, (n, n), 1)
    return (r == c).astype(dtype)


def _tdot(a, b):
    # a.T @ b without an explicit transpose (contract the leading axis of both).
    return jax.lax.dot_general(a, b, (((0,), (0,)), ((), ())),
                               preferred_element_type=F32)


# -------------------- parameter packing (done ONCE at param-init) ------------
def _param_layout(cin, h, k):
    """Static row offsets of each parameter inside the packed (rows, 128) slab."""
    rows_gcn = _ceil8(cin)
    rows_h = _ceil8(h)
    layout = {}
    layout["w_gcn"] = 0
    layout["w1"] = rows_gcn
    layout["w2"] = layout["w1"] + rows_h
    layout["w_rel"] = layout["w2"] + rows_h
    layout["w_root"] = layout["w_rel"] + rows_h
    layout["bias"] = layout["w_root"] + rows_h   # 4 bias rows: b_gcn, b1, b2, b_rel
    total_rows = layout["bias"] + 8
    return layout, total_rows


def pack_poga_params(params, cin, h, k):
    """Pack all weights/biases into one lane-dense (rows, 128) f32 slab."""
    layout, total_rows = _param_layout(cin, h, k)
    slab = jnp.zeros((total_rows, LANES), F32)

    def put(s, a, r0):
        return jax.lax.dynamic_update_slice(s, a.astype(F32), (r0, 0))

    slab = put(slab, params["w_gcn"], layout["w_gcn"])
    slab = put(slab, params["w1"], layout["w1"])
    slab = put(slab, params["w2"], layout["w2"])
    slab = put(slab, params["w_rel"], layout["w_rel"])
    slab = put(slab, params["w_root"], layout["w_root"])
    slab = put(slab, params["b_gcn"].reshape(1, -1), layout["bias"] + 0)
    slab = put(slab, params["b1"].reshape(1, -1), layout["bias"] + 1)
    slab = put(slab, params["b2"].reshape(1, -1), layout["bias"] + 2)
    slab = put(slab, params["b_rel"].reshape(1, -1), layout["bias"] + 3)
    return slab


# -------------------- fused PoGa forward kernel ------------------------------
def _poga_kernel(x_ref, adj_ref, p_ref, xo_ref, loss_ref, *, N, CIN, H, K, layout):
    B = adj_ref.shape[0]

    # ---- unpack the single packed parameter slab (static sub-tile slices) ---
    ob = layout["bias"]
    w_gcn = p_ref[layout["w_gcn"]:layout["w_gcn"] + CIN, :H]
    w1 = p_ref[layout["w1"]:layout["w1"] + H, :H]
    w2 = p_ref[layout["w2"]:layout["w2"] + H, :K]
    w_rel = p_ref[layout["w_rel"]:layout["w_rel"] + H, :H]
    w_root = p_ref[layout["w_root"]:layout["w_root"] + H, :H]
    b_gcn = p_ref[ob + 0:ob + 1, :H]
    b1 = p_ref[ob + 1:ob + 2, :H]
    b2 = p_ref[ob + 2:ob + 3, :K]
    b_rel = p_ref[ob + 3:ob + 4, :H]

    # constant masks / scalars: built ONCE and reused across graphs
    eye_k = _eye(K)
    off_diag_k = 1.0 - eye_k
    i_fro = float(K) ** 0.5
    eye_k_norm = eye_k * (1.0 / i_fro)
    cluster_scale = i_fro / float(N)

    # ---- phase 1: per-graph symmetric GCN normalization ---------------------
    # A_norm X = D^-1/2 (A+I) D^-1/2 X = d^-1/2 * (A @ (d^-1/2 * x) + d^-1/2*x)
    # with d = deg(A) + 1 (adjacency symmetric, no self loops). One row-sum
    # reduce per graph; deg is reused for the spectral loss below.
    ax_parts, degs, adjs = [], [], []
    for b in range(B):                      # static unroll (B is tiny)
        adj = adj_ref[b]                    # (N, N)
        deg = jnp.sum(adj, axis=1, keepdims=True)            # (N, 1)
        inv_sq = jax.lax.rsqrt(deg + 1.0)                     # EUP rsqrt
        xd = x_ref[b] * inv_sq                                # (N, CIN)
        ax_parts.append(
            inv_sq * (jnp.dot(adj, xd, preferred_element_type=F32) + xd))
        degs.append(deg)
        adjs.append(adj)
    ax_all = jnp.concatenate(ax_parts, axis=0)                # (B*N, CIN)

    # ---- phase 2: batched GCN weight matmul + ReLU + DMoN MLP + softmax -----
    h1_all = jnp.maximum(
        jnp.dot(ax_all, w_gcn, preferred_element_type=F32) + b_gcn, 0.0)  # (B*N,H)
    # cluster-assignment MLP (Linear -> Linear, no activation) + softmax
    # TODO(synk): dropout is eval-mode identity.
    hmid = jnp.dot(h1_all, w1, preferred_element_type=F32) + b1
    logits = jnp.dot(hmid, w2, preferred_element_type=F32) + b2
    logits = logits - jnp.max(logits, axis=-1, keepdims=True)
    e = jnp.exp(logits)
    s_all = e * pl.reciprocal(jnp.sum(e, axis=-1, keepdims=True), approx=True)

    # ---- phase 3: per-graph DMoN pooling + losses + pooled-adjacency conv ---
    loss_acc = jnp.zeros((1, 1), F32)
    px_parts, agg_parts = [], []
    for b in range(B):
        r0 = b * N
        s = s_all[r0:r0 + N]                                   # (N, K)
        h1 = h1_all[r0:r0 + N]                                 # (N, H)
        adj = adjs[b]
        deg = degs[b]

        # pooled features: selu(s^T h1)
        sx = _tdot(s, h1)                                      # (K, H)
        px = SELU_SCALE * jnp.where(sx > 0, sx,
                                    SELU_ALPHA * (jnp.exp(sx) - 1.0))

        # pooled adjacency: s^T A s
        a_s = jnp.dot(adj, s, preferred_element_type=F32)      # (N, K)
        out_adj = _tdot(s, a_s)                                # (K, K)

        # spectral (modularity) loss (only the trace terms are needed)
        two_m = jnp.sum(deg)                                   # == 2*m
        ca = jnp.sum(deg * s, axis=0, keepdims=True)           # (1, K) = s^T deg
        trace_out = jnp.sum(out_adj * eye_k)
        spectral = -(trace_out - jnp.sum(ca * ca) / two_m) / two_m  # empty graph -> inf, matches PyG

        # orthogonality loss
        ss = _tdot(s, s)                                       # (K, K)
        ss_fro = jnp.sqrt(jnp.sum(ss * ss))
        diff = ss / ss_fro - eye_k_norm
        ortho = jnp.sqrt(jnp.sum(diff * diff))

        # cluster-size loss (mask.sum == N for every graph)
        cs = jnp.sum(s, axis=0, keepdims=True)                 # (1, K)
        cluster = jnp.sqrt(jnp.sum(cs * cs)) * cluster_scale - 1.0

        loss_acc = loss_acc + (spectral + ortho + cluster)

        # zero diagonal + symmetric re-normalization, folded straight into the
        # DenseGraphConv aggregation: agg = D^-1/2 oa D^-1/2 px
        # (oa symmetric -> row sums == column sums, matches PyG exactly)
        oa = out_adj * off_diag_k
        inv_d = pl.reciprocal(
            jnp.sqrt(jnp.sum(oa, axis=1, keepdims=True)) + EPS, approx=True)  # (K,1)
        agg = inv_d * jnp.dot(oa, px * inv_d, preferred_element_type=F32)      # (K,H)

        px_parts.append(px)
        agg_parts.append(agg)

    # ---- DenseGraphConv (aggr='add'): lin_rel(A @ x) + lin_root(x), batched -
    px_all = jnp.concatenate(px_parts, axis=0)                 # (B*K, H)
    agg_all = jnp.concatenate(agg_parts, axis=0)               # (B*K, H)
    xo_all = (jnp.dot(agg_all, w_rel, preferred_element_type=F32) + b_rel
              + jnp.dot(px_all, w_root, preferred_element_type=F32))
    for b in range(B):
        xo_ref[b] = xo_all[b * K:(b + 1) * K]

    # pool_loss = mean(sp) + mean(ortho) + mean(cluster), one tiny output
    loss_ref[...] = loss_acc * (1.0 / float(B))


# -------------------- wrapper -------------------------------------------------
def poga_forward(x, adj, param_slab, *, cin, h, k):
    b_, n, _ = adj.shape
    layout, rows = _param_layout(cin, h, k)
    assert param_slab.shape == (rows, LANES)

    # to_dense_batch: every graph has exactly n nodes -> plain reshape
    x3 = x.reshape(b_, n, cin)

    bn = b_ * n
    flops = (
        2 * b_ * n * n * cin                      # per-graph adj @ (d^-1/2 x)
        + 2 * bn * cin * h                        # GCN weight matmul
        + 2 * bn * h * h                          # DMoN MLP layer 1
        + 2 * bn * h * k                          # DMoN MLP layer 2
        + 2 * b_ * (n * k * h + n * n * k + n * k * k + k * k * h)  # pooling
        + 2 * (b_ * k) * h * h * 2                # DenseGraphConv lin_rel/root
    )
    transcendentals = bn * k + b_ * k * h + bn + b_ * n + b_ * k
    bytes_accessed = 4 * (bn * cin + b_ * n * n + rows * LANES + b_ * k * h + 1)

    kernel = functools.partial(_poga_kernel, N=n, CIN=cin, H=h, K=k, layout=layout)

    x_out, loss = pl.pallas_call(
        kernel,
        out_shape=(jax.ShapeDtypeStruct((b_, k, h), F32),
                   jax.ShapeDtypeStruct((1, 1), F32)),
        grid=(1,),
        in_specs=[
            pl.BlockSpec((b_, n, cin), lambda i: (0, 0, 0)),
            pl.BlockSpec((b_, n, n), lambda i: (0, 0, 0)),
            pl.BlockSpec((rows, LANES), lambda i: (0, 0)),
        ],
        out_specs=(pl.BlockSpec((b_, k, h), lambda i: (0, 0, 0)),
                   pl.BlockSpec((1, 1), lambda i: (0, 0))),
        compiler_params=pltpu.CompilerParams(
            dimension_semantics=("arbitrary",)),
        cost_estimate=pl.CostEstimate(flops=flops,
                                      transcendentals=transcendentals,
                                      bytes_accessed=bytes_accessed),
    )(x3, adj, param_slab)

    return x_out, loss[0, 0]


if __name__ == "__main__":
    B, N, CIN, H, K = 2, 16, 4, 32, 8   # batch, nodes/graph, in_ch, hidden, clusters

    key = jax.random.PRNGKey(0)
    k_x, k_adj, k_w = jax.random.split(key, 3)

    # node features and a random symmetric adjacency (no self loops) per graph
    x = jax.random.normal(k_x, (B * N, CIN), dtype=F32)
    r = jax.random.uniform(k_adj, (B, N, N))
    adj = ((r + jnp.swapaxes(r, 1, 2)) > 1.0).astype(F32)
    adj = adj * (1.0 - jnp.eye(N, dtype=F32))

    # deterministic parameter init
    ks = jax.random.split(k_w, 8)

    def init(kk, shape, fan_in):
        return jax.random.normal(kk, shape, dtype=F32) / jnp.sqrt(
            jnp.asarray(fan_in, F32))

    params = {
        "w_gcn": init(ks[0], (CIN, H), CIN),      # GCNConv weight
        "b_gcn": jnp.zeros((H,), F32),            # GCNConv bias
        "w1": init(ks[1], (H, H), H),             # DMoN MLP layer 1
        "b1": init(ks[2], (H,), H),
        "w2": init(ks[3], (H, K), H),             # DMoN MLP layer 2 (-> k)
        "b2": init(ks[4], (K,), H),
        "w_rel": init(ks[5], (H, H), H),          # DenseGraphConv lin_rel
        "b_rel": init(ks[6], (H,), H),
        "w_root": init(ks[7], (H, H), H),         # DenseGraphConv lin_root (no bias)
    }

    # pack ALL weights/biases into one lane-dense slab ONCE (single input DMA)
    param_slab = pack_poga_params(params, CIN, H, K)

    fwd = jax.jit(functools.partial(poga_forward, cin=CIN, h=H, k=K))
    out_x, pool_loss = fwd(x, adj, param_slab)
    jax.block_until_ready(out_x)
    jax.block_until_ready(pool_loss)
    assert out_x.shape == (B, K, H)
    assert pool_loss.shape == ()
    print("KERNEL_OK")
</pallas_src>

<mosaic_0001>
module attributes {stable_mosaic.version = 11 : i64} {
  func.func @_poga_kernel(%arg0: i32, %arg1: memref<2x16x4xf32, #tpu.memory_space<vmem>>, %arg2: memref<2x16x16xf32, #tpu.memory_space<vmem>>, %arg3: memref<144x128xf32, #tpu.memory_space<vmem>>, %arg4: memref<2x8x32xf32, #tpu.memory_space<vmem>>, %arg5: memref<1x1xf32, #tpu.memory_space<vmem>>) attributes {dimension_semantics = [#tpu.dimension_semantics<arbitrary>], iteration_bounds = array<i64: 1>, scalar_prefetch = 0 : i64, scratch_operands = 0 : i64, tpu.core_type = #tpu.core_type<tc>, window_params = [{pipeline_mode = #tpu.pipeline_mode<synchronous>, transform_indices = @transform_0, window_bounds = array<i64: 2, 16, 4>}, {pipeline_mode = #tpu.pipeline_mode<synchronous>, transform_indices = @transform_1, window_bounds = array<i64: 2, 16, 16>}, {pipeline_mode = #tpu.pipeline_mode<synchronous>, transform_indices = @transform_2, window_bounds = array<i64: 144, 128>}, {pipeline_mode = #tpu.pipeline_mode<synchronous>, transform_indices = @transform_3, window_bounds = array<i64: 2, 8, 32>}, {pipeline_mode = #tpu.pipeline_mode<synchronous>, transform_indices = @transform_4, window_bounds = array<i64: 1, 1>}]} {
    %c0 = arith.constant 0 : index
    %c0_0 = arith.constant 0 : index
    %0 = vector.load %arg3[%c0, %c0_0] : memref<144x128xf32, #tpu.memory_space<vmem>>, vector<4x32xf32>
    %c8 = arith.constant 8 : index
    %c0_1 = arith.constant 0 : index
    %1 = vector.load %arg3[%c8, %c0_1] : memref<144x128xf32, #tpu.memory_space<vmem>>, vector<32x32xf32>
    %c40 = arith.constant 40 : index
    %c0_2 = arith.constant 0 : index
    %2 = vector.load %arg3[%c40, %c0_2] : memref<144x128xf32, #tpu.memory_space<vmem>>, vector<32x8xf32>
    %c72 = arith.constant 72 : index
    %c0_3 = arith.constant 0 : index
    %3 = vector.load %arg3[%c72, %c0_3] : memref<144x128xf32, #tpu.memory_space<vmem>>, vector<32x32xf32>
    %c104 = arith.constant 104 : index
    %c0_4 = arith.constant 0 : index
    %4 = vector.load %arg3[%c104, %c0_4] : memref<144x128xf32, #tpu.memory_space<vmem>>, vector<32x32xf32>
    %c136 = arith.constant 136 : index
    %c0_5 = arith.constant 0 : index
    %5 = vector.load %arg3[%c136, %c0_5] : memref<144x128xf32, #tpu.memory_space<vmem>>, vector<1x32xf32>
    %c137 = arith.constant 137 : index
    %c0_6 = arith.constant 0 : index
    %6 = vector.load %arg3[%c137, %c0_6] : memref<144x128xf32, #tpu.memory_space<vmem>>, vector<1x32xf32>
    %c138 = arith.constant 138 : index
    %c0_7 = arith.constant 0 : index
    %7 = vector.load %arg3[%c138, %c0_7] : memref<144x128xf32, #tpu.memory_space<vmem>>, vector<1x8xf32>
    %c139 = arith.constant 139 : index
    %c0_8 = arith.constant 0 : index
    %8 = vector.load %arg3[%c139, %c0_8] : memref<144x128xf32, #tpu.memory_space<vmem>>, vector<1x32xf32>
    %9 = tpu.iota {dimensions = array<i32: 0>} : vector<8x8xi32>
    %10 = tpu.iota {dimensions = array<i32: 1>} : vector<8x8xi32>
    %11 = arith.cmpi eq, %9, %10 : vector<8x8xi32>
    %12 = arith.extui %11 : vector<8x8xi1> to vector<8x8xi32>
    %13 = arith.sitofp %12 : vector<8x8xi32> to vector<8x8xf32>
    %cst = arith.constant 1.000000e+00 : f32
    %14 = vector.broadcast %cst : f32 to vector<8x8xf32>
    %15 = arith.subf %14, %13 : vector<8x8xf32>
    %cst_9 = arith.constant 0.353553385 : f32
    %16 = vector.broadcast %cst_9 : f32 to vector<8x8xf32>
    %17 = arith.mulf %13, %16 : vector<8x8xf32>
    %c0_10 = arith.constant 0 : index
    %c0_11 = arith.constant 0 : index
    %c0_12 = arith.constant 0 : index
    %18 = vector.load %arg2[%c0_10, %c0_11, %c0_12] : memref<2x16x16xf32, #tpu.memory_space<vmem>>, vector<1x16x16xf32>
    %19 = vector.shape_cast %18 : vector<1x16x16xf32> to vector<16x16xf32>
    %cst_13 = arith.constant dense<0.000000e+00> : vector<16xf32>
    %20 = vector.multi_reduction <add>, %19, %cst_13 [1] : vector<16x16xf32> to vector<16xf32>
    %21 = vector.shape_cast %20 : vector<16xf32> to vector<16x1xf32>
    %cst_14 = arith.constant 1.000000e+00 : f32
    %22 = vector.broadcast %cst_14 : f32 to vector<16x1xf32>
    %23 = arith.addf %21, %22 : vector<16x1xf32>
    %24 = math.rsqrt %23 : vector<16x1xf32>
    %c0_15 = arith.constant 0 : index
    %c0_16 = arith.constant 0 : index
    %c0_17 = arith.constant 0 : index
    %25 = vector.load %arg1[%c0_15, %c0_16, %c0_17] : memref<2x16x4xf32, #tpu.memory_space<vmem>>, vector<1x16x4xf32>
    %26 = vector.shape_cast %25 : vector<1x16x4xf32> to vector<16x4xf32>
    %27 = vector.broadcast %24 : vector<16x1xf32> to vector<16x4xf32>
    %28 = arith.mulf %26, %27 : vector<16x4xf32>
    %cst_18 = arith.constant dense<0.000000e+00> : vector<16x4xf32>
    %29 = tpu.matmul %19, %28, %cst_18 {dimension_numbers = #tpu.dot_dimension_numbers<[1], [0], [0], [1], [0, 0, 1, 1], [], []>} : vector<16x16xf32>, vector<16x4xf32>, vector<16x4xf32> -> vector<16x4xf32>
    %30 = arith.addf %29, %28 : vector<16x4xf32>
    %31 = vector.broadcast %24 : vector<16x1xf32> to vector<16x4xf32>
    %32 = arith.mulf %31, %30 : vector<16x4xf32>
    %c1 = arith.constant 1 : index
    %c0_19 = arith.constant 0 : index
    %c0_20 = arith.constant 0 : index
    %33 = vector.load %arg2[%c1, %c0_19, %c0_20] : memref<2x16x16xf32, #tpu.memory_space<vmem>>, vector<1x16x16xf32>
    %34 = vector.shape_cast %33 : vector<1x16x16xf32> to vector<16x16xf32>
    %cst_21 = arith.constant dense<0.000000e+00> : vector<16xf32>
    %35 = vector.multi_reduction <add>, %34, %cst_21 [1] : vector<16x16xf32> to vector<16xf32>
    %36 = vector.shape_cast %35 : vector<16xf32> to vector<16x1xf32>
    %cst_22 = arith.constant 1.000000e+00 : f32
    %37 = vector.broadcast %cst_22 : f32 to vector<16x1xf32>
    %38 = arith.addf %36, %37 : vector<16x1xf32>
    %39 = math.rsqrt %38 : vector<16x1xf32>
    %c1_23 = arith.constant 1 : index
    %c0_24 = arith.constant 0 : index
    %c0_25 = arith.constant 0 : index
    %40 = vector.load %arg1[%c1_23, %c0_24, %c0_25] : memref<2x16x4xf32, #tpu.memory_space<vmem>>, vector<1x16x4xf32>
    %41 = vector.shape_cast %40 : vector<1x16x4xf32> to vector<16x4xf32>
    %42 = vector.broadcast %39 : vector<16x1xf32> to vector<16x4xf32>
    %43 = arith.mulf %41, %42 : vector<16x4xf32>
    %cst_26 = arith.constant dense<0.000000e+00> : vector<16x4xf32>
    %44 = tpu.matmul %34, %43, %cst_26 {dimension_numbers = #tpu.dot_dimension_numbers<[1], [0], [0], [1], [0, 0, 1, 1], [], []>} : vector<16x16xf32>, vector<16x4xf32>, vector<16x4xf32> -> vector<16x4xf32>
    %45 = arith.addf %44, %43 : vector<16x4xf32>
    %46 = vector.broadcast %39 : vector<16x1xf32> to vector<16x4xf32>
    %47 = arith.mulf %46, %45 : vector<16x4xf32>
    %48 = tpu.concatenate %32, %47 in 0 : vector<16x4xf32>, vector<16x4xf32> -> vector<32x4xf32>
    %cst_27 = arith.constant dense<0.000000e+00> : vector<32x32xf32>
    %49 = tpu.matmul %48, %0, %cst_27 {dimension_numbers = #tpu.dot_dimension_numbers<[1], [0], [0], [1], [0, 0, 1, 1], [], []>} : vector<32x4xf32>, vector<4x32xf32>, vector<32x32xf32> -> vector<32x32xf32>
    %50 = vector.broadcast %5 : vector<1x32xf32> to vector<32x32xf32>
    %51 = arith.addf %49, %50 : vector<32x32xf32>
    %cst_28 = arith.constant 0.000000e+00 : f32
    %52 = vector.broadcast %cst_28 : f32 to vector<32x32xf32>
    %53 = arith.maximumf %51, %52 : vector<32x32xf32>
    %cst_29 = arith.constant dense<0.000000e+00> : vector<32x32xf32>
    %54 = tpu.matmul %53, %1, %cst_29 {dimension_numbers = #tpu.dot_dimension_numbers<[1], [0], [0], [1], [0, 0, 1, 1], [], []>} : vector<32x32xf32>, vector<32x32xf32>, vector<32x32xf32> -> vector<32x32xf32>
    %55 = vector.broadcast %6 : vector<1x32xf32> to vector<32x32xf32>
    %56 = arith.addf %54, %55 : vector<32x32xf32>
    %cst_30 = arith.constant dense<0.000000e+00> : vector<32x8xf32>
    %57 = tpu.matmul %56, %2, %cst_30 {dimension_numbers = #tpu.dot_dimension_numbers<[1], [0], [0], [1], [0, 0, 1, 1], [], []>} : vector<32x32xf32>, vector<32x8xf32>, vector<32x8xf32> -> vector<32x8xf32>
    %58 = vector.broadcast %7 : vector<1x8xf32> to vector<32x8xf32>
    %59 = arith.addf %57, %58 : vector<32x8xf32>
    %cst_31 = arith.constant dense<0xFF800000> : vector<32xf32>
    %60 = vector.multi_reduction <maximumf>, %59, %cst_31 [1] : vector<32x8xf32> to vector<32xf32>
    %61 = vector.shape_cast %60 : vector<32xf32> to vector<32x1xf32>
    %62 = vector.broadcast %61 : vector<32x1xf32> to vector<32x8xf32>
    %63 = arith.subf %59, %62 : vector<32x8xf32>
    %64 = math.exp %63 : vector<32x8xf32>
    %cst_32 = arith.constant dense<0.000000e+00> : vector<32xf32>
    %65 = vector.multi_reduction <add>, %64, %cst_32 [1] : vector<32x8xf32> to vector<32xf32>
    %66 = vector.shape_cast %65 : vector<32xf32> to vector<32x1xf32>
    %67 = tpu.reciprocal %66 {approx = true} : vector<32x1xf32> -> vector<32x1xf32>
    %68 = vector.broadcast %67 : vector<32x1xf32> to vector<32x8xf32>
    %69 = arith.mulf %64, %68 : vector<32x8xf32>
    %cst_33 = arith.constant 0.000000e+00 : f32
    %70 = vector.broadcast %cst_33 : f32 to vector<1x1xf32>
    %71 = vector.extract_strided_slice %69 {offsets = [0, 0], sizes = [16, 8], strides = [1, 1]} : vector<32x8xf32> to vector<16x8xf32>
    %72 = vector.extract_strided_slice %53 {offsets = [0, 0], sizes = [16, 32], strides = [1, 1]} : vector<32x32xf32> to vector<16x32xf32>
    %cst_34 = arith.constant dense<0.000000e+00> : vector<8x32xf32>
    %73 = tpu.matmul %71, %72, %cst_34 {dimension_numbers = #tpu.dot_dimension_numbers<[0], [0], [1], [1], [0, 1, 1, 1], [], []>} : vector<16x8xf32>, vector<16x32xf32>, vector<8x32xf32> -> vector<8x32xf32>
    %cst_35 = arith.constant 0.000000e+00 : f32
    %74 = vector.broadcast %cst_35 : f32 to vector<8x32xf32>
    %75 = arith.cmpf ogt, %73, %74 : vector<8x32xf32>
    %76 = math.exp %73 : vector<8x32xf32>
    %cst_36 = arith.constant 1.000000e+00 : f32
    %77 = vector.broadcast %cst_36 : f32 to vector<8x32xf32>
    %78 = arith.subf %76, %77 : vector<8x32xf32>
    %cst_37 = arith.constant 1.67326319 : f32
    %79 = vector.broadcast %cst_37 : f32 to vector<8x32xf32>
    %80 = arith.mulf %79, %78 : vector<8x32xf32>
    %81 = arith.select %75, %73, %80 : vector<8x32xi1>, vector<8x32xf32>
    %cst_38 = arith.constant 1.05070102 : f32
    %82 = vector.broadcast %cst_38 : f32 to vector<8x32xf32>
    %83 = arith.mulf %82, %81 : vector<8x32xf32>
    %cst_39 = arith.constant dense<0.000000e+00> : vector<16x8xf32>
    %84 = tpu.matmul %19, %71, %cst_39 {dimension_numbers = #tpu.dot_dimension_numbers<[1], [0], [0], [1], [0, 0, 1, 1], [], []>} : vector<16x16xf32>, vector<16x8xf32>, vector<16x8xf32> -> vector<16x8xf32>
    %cst_40 = arith.constant dense<0.000000e+00> : vector<8x8xf32>
    %85 = tpu.matmul %71, %84, %cst_40 {dimension_numbers = #tpu.dot_dimension_numbers<[0], [0], [1], [1], [0, 1, 1, 1], [], []>} : vector<16x8xf32>, vector<16x8xf32>, vector<8x8xf32> -> vector<8x8xf32>
    %86 = vector.shape_cast %21 : vector<16x1xf32> to vector<1x16x1xf32>
    %cst_41 = arith.constant dense<0.000000e+00> : vector<1xf32>
    %87 = vector.multi_reduction <add>, %86, %cst_41 [1, 2] : vector<1x16x1xf32> to vector<1xf32>
    %88 = vector.shape_cast %87 : vector<1xf32> to vector<1x1x1xf32>
    %89 = vector.extract %88[0, 0, 0] : f32 from vector<1x1x1xf32>
    %90 = vector.broadcast %21 : vector<16x1xf32> to vector<16x8xf32>
    %91 = arith.mulf %90, %71 : vector<16x8xf32>
    %cst_42 = arith.constant dense<0.000000e+00> : vector<8xf32>
    %92 = vector.multi_reduction <add>, %91, %cst_42 [0] : vector<16x8xf32> to vector<8xf32>
    %93 = vector.shape_cast %92 : vector<8xf32> to vector<1x8xf32>
    %94 = arith.mulf %85, %13 : vector<8x8xf32>
    %95 = vector.shape_cast %94 : vector<8x8xf32> to vector<1x8x8xf32>
    %cst_43 = arith.constant dense<0.000000e+00> : vector<1xf32>
    %96 = vector.multi_reduction <add>, %95, %cst_43 [1, 2] : vector<1x8x8xf32> to vector<1xf32>
    %97 = vector.shape_cast %96 : vector<1xf32> to vector<1x1x1xf32>
    %98 = vector.extract %97[0, 0, 0] : f32 from vector<1x1x1xf32>
    %99 = arith.mulf %93, %93 : vector<1x8xf32>
    %100 = vector.shape_cast %99 : vector<1x8xf32> to vector<1x1x8xf32>
    %cst_44 = arith.constant dense<0.000000e+00> : vector<1xf32>
    %101 = vector.multi_reduction <add>, %100, %cst_44 [1, 2] : vector<1x1x8xf32> to vector<1xf32>
    %102 = vector.shape_cast %101 : vector<1xf32> to vector<1x1x1xf32>
    %103 = vector.extract %102[0, 0, 0] : f32 from vector<1x1x1xf32>
    %104 = arith.divf %103, %89 : f32
    %105 = arith.subf %98, %104 : f32
    %cst_45 = arith.constant 0.000000e+00 : f32
    %106 = arith.subf %cst_45, %105 : f32
    %107 = arith.divf %106, %89 : f32
    %cst_46 = arith.constant dense<0.000000e+00> : vector<8x8xf32>
    %108 = tpu.matmul %71, %71, %cst_46 {dimension_numbers = #tpu.dot_dimension_numbers<[0], [0], [1], [1], [0, 1, 1, 1], [], []>} : vector<16x8xf32>, vector<16x8xf32>, vector<8x8xf32> -> vector<8x8xf32>
    %109 = arith.mulf %108, %108 : vector<8x8xf32>
    %110 = vector.shape_cast %109 : vector<8x8xf32> to vector<1x8x8xf32>
    %cst_47 = arith.constant dense<0.000000e+00> : vector<1xf32>
    %111 = vector.multi_reduction <add>, %110, %cst_47 [1, 2] : vector<1x8x8xf32> to vector<1xf32>
    %112 = vector.shape_cast %111 : vector<1xf32> to vector<1x1x1xf32>
    %113 = vector.extract %112[0, 0, 0] : f32 from vector<1x1x1xf32>
    %114 = math.sqrt %113 : f32
    %115 = vector.broadcast %114 : f32 to vector<8x8xf32>
    %116 = arith.divf %108, %115 : vector<8x8xf32>
    %117 = arith.subf %116, %17 : vector<8x8xf32>
    %118 = arith.mulf %117, %117 : vector<8x8xf32>
    %119 = vector.shape_cast %118 : vector<8x8xf32> to vector<1x8x8xf32>
    %cst_48 = arith.constant dense<0.000000e+00> : vector<1xf32>
    %120 = vector.multi_reduction <add>, %119, %cst_48 [1, 2] : vector<1x8x8xf32> to vector<1xf32>
    %121 = vector.shape_cast %120 : vector<1xf32> to vector<1x1x1xf32>
    %122 = vector.extract %121[0, 0, 0] : f32 from vector<1x1x1xf32>
    %123 = math.sqrt %122 : f32
    %cst_49 = arith.constant dense<0.000000e+00> : vector<8xf32>
    %124 = vector.multi_reduction <add>, %71, %cst_49 [0] : vector<16x8xf32> to vector<8xf32>
    %125 = vector.shape_cast %124 : vector<8xf32> to vector<1x8xf32>
    %126 = arith.mulf %125, %125 : vector<1x8xf32>
    %127 = vector.shape_cast %126 : vector<1x8xf32> to vector<1x1x8xf32>
    %cst_50 = arith.constant dense<0.000000e+00> : vector<1xf32>
    %128 = vector.multi_reduction <add>, %127, %cst_50 [1, 2] : vector<1x1x8xf32> to vector<1xf32>
    %129 = vector.shape_cast %128 : vector<1xf32> to vector<1x1x1xf32>
    %130 = vector.extract %129[0, 0, 0] : f32 from vector<1x1x1xf32>
    %131 = math.sqrt %130 : f32
    %cst_51 = arith.constant 0.176776692 : f32
    %132 = arith.mulf %131, %cst_51 : f32
    %cst_52 = arith.constant 1.000000e+00 : f32
    %133 = arith.subf %132, %cst_52 : f32
    %134 = arith.addf %107, %123 : f32
    %135 = arith.addf %134, %133 : f32
    %136 = vector.broadcast %135 : f32 to vector<1x1xf32>
    %137 = arith.addf %70, %136 : vector<1x1xf32>
    %138 = arith.mulf %85, %15 : vector<8x8xf32>
    %cst_53 = arith.constant dense<0.000000e+00> : vector<8xf32>
    %139 = vector.multi_reduction <add>, %138, %cst_53 [1] : vector<8x8xf32> to vector<8xf32>
    %140 = vector.shape_cast %139 : vector<8xf32> to vector<8x1xf32>
    %141 = math.sqrt %140 : vector<8x1xf32>
    %cst_54 = arith.constant 1.000000e-15 : f32
    %142 = vector.broadcast %cst_54 : f32 to vector<8x1xf32>
    %143 = arith.addf %141, %142 : vector<8x1xf32>
    %144 = tpu.reciprocal %143 {approx = true} : vector<8x1xf32> -> vector<8x1xf32>
    %145 = vector.broadcast %144 : vector<8x1xf32> to vector<8x32xf32>
    %146 = arith.mulf %83, %145 : vector<8x32xf32>
    %cst_55 = arith.constant dense<0.000000e+00> : vector<8x32xf32>
    %147 = tpu.matmul %138, %146, %cst_55 {dimension_numbers = #tpu.dot_dimension_numbers<[1], [0], [0], [1], [0, 0, 1, 1], [], []>} : vector<8x8xf32>, vector<8x32xf32>, vector<8x32xf32> -> vector<8x32xf32>
    %148 = vector.broadcast %144 : vector<8x1xf32> to vector<8x32xf32>
    %149 = arith.mulf %148, %147 : vector<8x32xf32>
    %150 = vector.extract_strided_slice %69 {offsets = [16, 0], sizes = [16, 8], strides = [1, 1]} : vector<32x8xf32> to vector<16x8xf32>
    %151 = vector.extract_strided_slice %53 {offsets = [16, 0], sizes = [16, 32], strides = [1, 1]} : vector<32x32xf32> to vector<16x32xf32>
    %cst_56 = arith.constant dense<0.000000e+00> : vector<8x32xf32>
    %152 = tpu.matmul %150, %151, %cst_56 {dimension_numbers = #tpu.dot_dimension_numbers<[0], [0], [1], [1], [0, 1, 1, 1], [], []>} : vector<16x8xf32>, vector<16x32xf32>, vector<8x32xf32> -> vector<8x32xf32>
    %cst_57 = arith.constant 0.000000e+00 : f32
    %153 = vector.broadcast %cst_57 : f32 to vector<8x32xf32>
    %154 = arith.cmpf ogt, %152, %153 : vector<8x32xf32>
    %155 = math.exp %152 : vector<8x32xf32>
    %cst_58 = arith.constant 1.000000e+00 : f32
    %156 = vector.broadcast %cst_58 : f32 to vector<8x32xf32>
    %157 = arith.subf %155, %156 : vector<8x32xf32>
    %cst_59 = arith.constant 1.67326319 : f32
    %158 = vector.broadcast %cst_59 : f32 to vector<8x32xf32>
    %159 = arith.mulf %158, %157 : vector<8x32xf32>
    %160 = arith.select %154, %152, %159 : vector<8x32xi1>, vector<8x32xf32>
    %cst_60 = arith.constant 1.05070102 : f32
    %161 = vector.broadcast %cst_60 : f32 to vector<8x32xf32>
    %162 = arith.mulf %161, %160 : vector<8x32xf32>
    %cst_61 = arith.constant dense<0.000000e+00> : vector<16x8xf32>
    %163 = tpu.matmul %34, %150, %cst_61 {dimension_numbers = #tpu.dot_dimension_numbers<[1], [0], [0], [1], [0, 0, 1, 1], [], []>} : vector<16x16xf32>, vector<16x8xf32>, vector<16x8xf32> -> vector<16x8xf32>
    %cst_62 = arith.constant dense<0.000000e+00> : vector<8x8xf32>
    %164 = tpu.matmul %150, %163, %cst_62 {dimension_numbers = #tpu.dot_dimension_numbers<[0], [0], [1], [1], [0, 1, 1, 1], [], []>} : vector<16x8xf32>, vector<16x8xf32>, vector<8x8xf32> -> vector<8x8xf32>
    %165 = vector.shape_cast %36 : vector<16x1xf32> to vector<1x16x1xf32>
    %cst_63 = arith.constant dense<0.000000e+00> : vector<1xf32>
    %166 = vector.multi_reduction <add>, %165, %cst_63 [1, 2] : vector<1x16x1xf32> to vector<1xf32>
    %167 = vector.shape_cast %166 : vector<1xf32> to vector<1x1x1xf32>
    %168 = vector.extract %167[0, 0, 0] : f32 from vector<1x1x1xf32>
    %169 = vector.broadcast %36 : vector<16x1xf32> to vector<16x8xf32>
    %170 = arith.mulf %169, %150 : vector<16x8xf32>
    %cst_64 = arith.constant dense<0.000000e+00> : vector<8xf32>
    %171 = vector.multi_reduction <add>, %170, %cst_64 [0] : vector<16x8xf32> to vector<8xf32>
    %172 = vector.shape_cast %171 : vector<8xf32> to vector<1x8xf32>
    %173 = arith.mulf %164, %13 : vector<8x8xf32>
    %174 = vector.shape_cast %173 : vector<8x8xf32> to vector<1x8x8xf32>
    %cst_65 = arith.constant dense<0.000000e+00> : vector<1xf32>
    %175 = vector.multi_reduction <add>, %174, %cst_65 [1, 2] : vector<1x8x8xf32> to vector<1xf32>
    %176 = vector.shape_cast %175 : vector<1xf32> to vector<1x1x1xf32>
    %177 = vector.extract %176[0, 0, 0] : f32 from vector<1x1x1xf32>
    %178 = arith.mulf %172, %172 : vector<1x8xf32>
    %179 = vector.shape_cast %178 : vector<1x8xf32> to vector<1x1x8xf32>
    %cst_66 = arith.constant dense<0.000000e+00> : vector<1xf32>
    %180 = vector.multi_reduction <add>, %179, %cst_66 [1, 2] : vector<1x1x8xf32> to vector<1xf32>
    %181 = vector.shape_cast %180 : vector<1xf32> to vector<1x1x1xf32>
    %182 = vector.extract %181[0, 0, 0] : f32 from vector<1x1x1xf32>
    %183 = arith.divf %182, %168 : f32
    %184 = arith.subf %177, %183 : f32
    %cst_67 = arith.constant 0.000000e+00 : f32
    %185 = arith.subf %cst_67, %184 : f32
    %186 = arith.divf %185, %168 : f32
    %cst_68 = arith.constant dense<0.000000e+00> : vector<8x8xf32>
    %187 = tpu.matmul %150, %150, %cst_68 {dimension_numbers = #tpu.dot_dimension_numbers<[0], [0], [1], [1], [0, 1, 1, 1], [], []>} : vector<16x8xf32>, vector<16x8xf32>, vector<8x8xf32> -> vector<8x8xf32>
    %188 = arith.mulf %187, %187 : vector<8x8xf32>
    %189 = vector.shape_cast %188 : vector<8x8xf32> to vector<1x8x8xf32>
    %cst_69 = arith.constant dense<0.000000e+00> : vector<1xf32>
    %190 = vector.multi_reduction <add>, %189, %cst_69 [1, 2] : vector<1x8x8xf32> to vector<1xf32>
    %191 = vector.shape_cast %190 : vector<1xf32> to vector<1x1x1xf32>
    %192 = vector.extract %191[0, 0, 0] : f32 from vector<1x1x1xf32>
    %193 = math.sqrt %192 : f32
    %194 = vector.broadcast %193 : f32 to vector<8x8xf32>
    %195 = arith.divf %187, %194 : vector<8x8xf32>
    %196 = arith.subf %195, %17 : vector<8x8xf32>
    %197 = arith.mulf %196, %196 : vector<8x8xf32>
    %198 = vector.shape_cast %197 : vector<8x8xf32> to vector<1x8x8xf32>
    %cst_70 = arith.constant dense<0.000000e+00> : vector<1xf32>
    %199 = vector.multi_reduction <add>, %198, %cst_70 [1, 2] : vector<1x8x8xf32> to vector<1xf32>
    %200 = vector.shape_cast %199 : vector<1xf32> to vector<1x1x1xf32>
    %201 = vector.extract %200[0, 0, 0] : f32 from vector<1x1x1xf32>
    %202 = math.sqrt %201 : f32
    %cst_71 = arith.constant dense<0.000000e+00> : vector<8xf32>
    %203 = vector.multi_reduction <add>, %150, %cst_71 [0] : vector<16x8xf32> to vector<8xf32>
    %204 = vector.shape_cast %203 : vector<8xf32> to vector<1x8xf32>
    %205 = arith.mulf %204, %204 : vector<1x8xf32>
    %206 = vector.shape_cast %205 : vector<1x8xf32> to vector<1x1x8xf32>
    %cst_72 = arith.constant dense<0.000000e+00> : vector<1xf32>
    %207 = vector.multi_reduction <add>, %206, %cst_72 [1, 2] : vector<1x1x8xf32> to vector<1xf32>
    %208 = vector.shape_cast %207 : vector<1xf32> to vector<1x1x1xf32>
    %209 = vector.extract %208[0, 0, 0] : f32 from vector<1x1x1xf32>
    %210 = math.sqrt %209 : f32
    %cst_73 = arith.constant 0.176776692 : f32
    %211 = arith.mulf %210, %cst_73 : f32
    %cst_74 = arith.constant 1.000000e+00 : f32
    %212 = arith.subf %211, %cst_74 : f32
    %213 = arith.addf %186, %202 : f32
    %214 = arith.addf %213, %212 : f32
    %215 = vector.broadcast %214 : f32 to vector<1x1xf32>
    %216 = arith.addf %137, %215 : vector<1x1xf32>
    %217 = arith.mulf %164, %15 : vector<8x8xf32>
    %cst_75 = arith.constant dense<0.000000e+00> : vector<8xf32>
    %218 = vector.multi_reduction <add>, %217, %cst_75 [1] : vector<8x8xf32> to vector<8xf32>
    %219 = vector.shape_cast %218 : vector<8xf32> to vector<8x1xf32>
    %220 = math.sqrt %219 : vector<8x1xf32>
    %cst_76 = arith.constant 1.000000e-15 : f32
    %221 = vector.broadcast %cst_76 : f32 to vector<8x1xf32>
    %222 = arith.addf %220, %221 : vector<8x1xf32>
    %223 = tpu.reciprocal %222 {approx = true} : vector<8x1xf32> -> vector<8x1xf32>
    %224 = vector.broadcast %223 : vector<8x1xf32> to vector<8x32xf32>
    %225 = arith.mulf %162, %224 : vector<8x32xf32>
    %cst_77 = arith.constant dense<0.000000e+00> : vector<8x32xf32>
    %226 = tpu.matmul %217, %225, %cst_77 {dimension_numbers = #tpu.dot_dimension_numbers<[1], [0], [0], [1], [0, 0, 1, 1], [], []>} : vector<8x8xf32>, vector<8x32xf32>, vector<8x32xf32> -> vector<8x32xf32>
    %227 = vector.broadcast %223 : vector<8x1xf32> to vector<8x32xf32>
    %228 = arith.mulf %227, %226 : vector<8x32xf32>
    %229 = tpu.concatenate %83, %162 in 0 : vector<8x32xf32>, vector<8x32xf32> -> vector<16x32xf32>
    %230 = tpu.concatenate %149, %228 in 0 : vector<8x32xf32>, vector<8x32xf32> -> vector<16x32xf32>
    %cst_78 = arith.constant dense<0.000000e+00> : vector<16x32xf32>
    %231 = tpu.matmul %230, %3, %cst_78 {dimension_numbers = #tpu.dot_dimension_numbers<[1], [0], [0], [1], [0, 0, 1, 1], [], []>} : vector<16x32xf32>, vector<32x32xf32>, vector<16x32xf32> -> vector<16x32xf32>
    %232 = vector.broadcast %8 : vector<1x32xf32> to vector<16x32xf32>
    %233 = arith.addf %231, %232 : vector<16x32xf32>
    %cst_79 = arith.constant dense<0.000000e+00> : vector<16x32xf32>
    %234 = tpu.matmul %229, %4, %cst_79 {dimension_numbers = #tpu.dot_dimension_numbers<[1], [0], [0], [1], [0, 0, 1, 1], [], []>} : vector<16x32xf32>, vector<32x32xf32>, vector<16x32xf32> -> vector<16x32xf32>
    %235 = arith.addf %233, %234 : vector<16x32xf32>
    %236 = vector.extract_strided_slice %235 {offsets = [0, 0], sizes = [8, 32], strides = [1, 1]} : vector<16x32xf32> to vector<8x32xf32>
    %c0_80 = arith.constant 0 : index
    %c0_81 = arith.constant 0 : index
    %c0_82 = arith.constant 0 : index
    %237 = vector.load %arg4[%c0_80, %c0_81, %c0_82] : memref<2x8x32xf32, #tpu.memory_space<vmem>>, vector<1x8x32xf32>
    %238 = vector.shape_cast %237 : vector<1x8x32xf32> to vector<8x32xf32>
    %239 = vector.shape_cast %236 : vector<8x32xf32> to vector<1x8x32xf32>
    tpu.vector_store %arg4[%c0_80, %c0_81, %c0_82], %239 {strides = array<i32>} : memref<2x8x32xf32, #tpu.memory_space<vmem>>, vector<1x8x32xf32>,
    %240 = vector.extract_strided_slice %235 {offsets = [8, 0], sizes = [8, 32], strides = [1, 1]} : vector<16x32xf32> to vector<8x32xf32>
    %c1_83 = arith.constant 1 : index
    %c0_84 = arith.constant 0 : index
    %c0_85 = arith.constant 0 : index
    %241 = vector.load %arg4[%c1_83, %c0_84, %c0_85] : memref<2x8x32xf32, #tpu.memory_space<vmem>>, vector<1x8x32xf32>
    %242 = vector.shape_cast %241 : vector<1x8x32xf32> to vector<8x32xf32>
    %243 = vector.shape_cast %240 : vector<8x32xf32> to vector<1x8x32xf32>
    tpu.vector_store %arg4[%c1_83, %c0_84, %c0_85], %243 {strides = array<i32>} : memref<2x8x32xf32, #tpu.memory_space<vmem>>, vector<1x8x32xf32>,
    %cst_86 = arith.constant 5.000000e-01 : f32
    %244 = vector.broadcast %cst_86 : f32 to vector<1x1xf32>
    %245 = arith.mulf %216, %244 : vector<1x1xf32>
    %c0_87 = arith.constant 0 : index
    %c0_88 = arith.constant 0 : index
    %246 = vector.load %arg5[%c0_87, %c0_88] : memref<1x1xf32, #tpu.memory_space<vmem>>, vector<1x1xf32>
    tpu.vector_store %arg5[%c0_87, %c0_88], %245 {strides = array<i32>} : memref<1x1xf32, #tpu.memory_space<vmem>>, vector<1x1xf32>,
    return
  }
  func.func @transform_0(%arg0: i32) -> (i32, i32, i32) {
    %c0_i32 = arith.constant 0 : i32
    %c0_i32_0 = arith.constant 0 : i32
    %c0_i32_1 = arith.constant 0 : i32
    %c0_i32_2 = arith.constant 0 : i32
    return %c0_i32, %c0_i32_0, %c0_i32_1 : i32, i32, i32
  }
  func.func @transform_1(%arg0: i32) -> (i32, i32, i32) {
    %c0_i32 = arith.constant 0 : i32
    %c0_i32_0 = arith.constant 0 : i32
    %c0_i32_1 = arith.constant 0 : i32
    %c0_i32_2 = arith.constant 0 : i32
    return %c0_i32, %c0_i32_0, %c0_i32_1 : i32, i32, i32
  }
  func.func @transform_2(%arg0: i32) -> (i32, i32) {
    %c0_i32 = arith.constant 0 : i32
    %c0_i32_0 = arith.constant 0 : i32
    %c0_i32_1 = arith.constant 0 : i32
    return %c0_i32, %c0_i32_0 : i32, i32
  }
  func.func @transform_3(%arg0: i32) -> (i32, i32, i32) {
    %c0_i32 = arith.constant 0 : i32
    %c0_i32_0 = arith.constant 0 : i32
    %c0_i32_1 = arith.constant 0 : i32
    %c0_i32_2 = arith.constant 0 : i32
    return %c0_i32, %c0_i32_0, %c0_i32_1 : i32, i32, i32
  }
  func.func @transform_4(%arg0: i32) -> (i32, i32) {
    %c0_i32 = arith.constant 0 : i32
    %c0_i32_0 = arith.constant 0 : i32
    %c0_i32_1 = arith.constant 0 : i32
    return %c0_i32, %c0_i32_0 : i32, i32
  }
}

</mosaic_0001>

<llo_original>
// kernel: poga_forward.1
$region0: #{poga_forward.1}
  #allocation0 [shape = 'u32[]', space=smem, size = 0x4, offset = 0x4, fixed_abs, tag = 'smem constant byte address 0x4 - core index']
  #allocation1 [shape = 'u32[144,128]{1,0:T(1,128)}', space=vmem, size = 0x12000, scoped, tag = 'internal scratch']
  %s0 = inlined_call_operand.vmem [shape: f32[2,16,4], index: 0, kind: input, shape index: {}]
  %s1 = inlined_call_operand.vmem [shape: f32[2,16,16], index: 1, kind: input, shape index: {}]
  %s2 = inlined_call_operand.hbm [shape: f32[144,128], index: 2, kind: input, shape index: {}]
  %s3 = inlined_call_operand.hbm [shape: f32[2,8,32], index: 3, kind: output, shape index: {0}]
  %s4 = inlined_call_operand.hbm [shape: f32[1,1], index: 4, kind: output, shape index: {1}]
  %5 = xla_tuple %s3, %s4
  %s6 = sld [smem:[#allocation0]]
  $region34: #{poga_forward.1} parent=0
    _
  %s8 = ssub.s32 1, %s6
  %s9 = scalar_select 0, %s8, %s6
  $region1: #{poga_forward.1} parent=0
    #allocation2 [shape = 'u8[73728]{0}', space=vmem, size = 0x12000, scoped, tag = 'input window, operand 2, single buffered']
    #allocation3 [shape = 's32[1]{0}', space=sflag, size = 0x4, scoped, tag = 'scoped memory for poga_forward.1']
    #allocation4 [shape = 's32[1]{0}', space=sflag, size = 0x4, scoped, tag = 'scoped memory for poga_forward.1']
    #allocation5 [shape = 'u8[8192]{0}', space=vmem, size = 0x2000, scoped, tag = 'output window, operand 0, single buffered']
    #allocation6 [shape = 'u8[512]{0}', space=vmem, size = 0x400, scoped, tag = 'output window, operand 1, single buffered']
    #allocation7 [shape = 's32[1]{0}', space=sflag, size = 0x4, scoped, tag = 'scoped memory for poga_forward.1']
    %10 = vsyncpa [#allocation3], 0
    %11 = vsyncpa [#allocation4], 0
    %12 = vsyncpa [#allocation7], 0
    // Predicated region
    $region2: #{poga_forward.1} parent=1 // pred_check
      _
    $region3: #{poga_forward.1} parent=1 // pred_check_branch
      %14 = sbr.rel (0) target = $region5
    $region4: #{poga_forward.1} parent=1 // pred_region
      _
    $region5: #{poga_forward.1} parent=1 // pred_fallthru
      _
    // Predicated region
    $region6: #{poga_forward.1} parent=1 // pred_check
      _
    $region7: #{poga_forward.1} parent=1 // pred_check_branch
      %16 = sbr.rel (0) target = $region9
    $region8: #{poga_forward.1} parent=1 // pred_region
      _
    $region9: #{poga_forward.1} parent=1 // pred_fallthru
      _
    // Predicated region
    $region10: #{poga_forward.1} parent=1 // pred_check
      _
    $region11: #{poga_forward.1} parent=1 // pred_check_branch
      %18 = sbr.rel (0) target = $region13
    $region12: #{poga_forward.1} parent=1 // pred_region
      %s20 = ssub.s32 2304, 2304
      %21 = vsyncadd [#allocation3], %s20
      %s22 = sshll.u32 [#allocation2], 4
      %s23 = int_to_ptr.vmem [resolvable:$true] %s22
      %28 = dma.hbm_to_vmem [thread:$0]  %s2, 2304, %s23, [#allocation3], 128, 128, 8
    $region13: #{poga_forward.1} parent=1 // pred_fallthru
      _
    // Predicated region
    $region14: #{poga_forward.1} parent=1 // pred_check
      _
    $region15: #{poga_forward.1} parent=1 // pred_check_branch
      %30 = sbr.rel (0) target = $region17
    $region16: #{poga_forward.1} parent=1 // pred_region
      %31 = dma.done [#allocation3], 2304
    $region17: #{poga_forward.1} parent=1 // pred_fallthru
      _
    %v32 = vld [vmem:[#allocation2] sm:$0xf]
    %v33 = vld [vmem:[#allocation2 + $0x8] sm:$0xff]
    %v34 = vld [vmem:[#allocation2 + $0x10] sm:$0xff]
    %v35 = vld [vmem:[#allocation2 + $0x18] sm:$0xff]
    %v36 = vld [vmem:[#allocation2 + $0x20] sm:$0xff]
    %v37 = vld [vmem:[#allocation2 + $0x28] sm:$0xff]
    %v38 = vld [vmem:[#allocation2 + $0x30] sm:$0xff]
    %v39 = vld [vmem:[#allocation2 + $0x38] sm:$0xff]
    %v40 = vld [vmem:[#allocation2 + $0x40] sm:$0xff]
    %v41 = vld [vmem:[#allocation2 + $0x48] sm:$0xff]
    %v42 = vld [vmem:[#allocation2 + $0x50] sm:$0xff]
    %v43 = vld [vmem:[#allocation2 + $0x58] sm:$0xff]
    %v44 = vld [vmem:[#allocation2 + $0x60] sm:$0xff]
    %v45 = vld [vmem:[#allocation2 + $0x68] sm:$0xff]
    %v46 = vld [vmem:[#allocation2 + $0x70] sm:$0xff]
    %v47 = vld [vmem:[#allocation2 + $0x78] sm:$0xff]
    %v48 = vld [vmem:[#allocation2 + $0x80] sm:$0xff]
    %v49 = vld [vmem:[#allocation2 + $0x88] sm:$0x1]
    %v50 = vld [vmem:[#allocation2 + $0x89] sm:$0x1]
    %v51 = vld [vmem:[#allocation2 + $0x8a] sm:$0x1]
    %v52 = vld [vmem:[#allocation2 + $0x8b] sm:$0x1]
    %v53 = vlaneseq
    %v54 = vshrl.u32 %v53, 7
    %v55 = vlaneseq
    %v56 = vand.u32 %v55, 127
    %vm57 = vcmp.eq.s32.totalorder %v54, %v56
    %v58 = vsel %vm57, 1, 0
    %v59 = vcvt.s32.f32 %v58
    %v60 = vsub.f32 1.0, %v59
    %v61 = vmul.f32 %v59, 0.35355338
    %v62 = vld [vmem:[%s1] sm:$0xff]
    %v63 = vld [vmem:[%s1 + $0x8] sm:$0xff]
    %vm64 = vcmask 130048
    %v65 = vsel %vm64, %v62, 0.0
    %66 = vadd.xlane.f32.xlu0 %v65
    %v67 = vpop.xlane.xlu0 %66
    %v68 = vsel %vm64, %v63, 0.0
    %69 = vadd.xlane.f32.xlu0 %v68
    %v70 = vpop.xlane.xlu0 %69
    %v71 = vadd.f32 %v67, 1.0
    %v72 = vadd.f32 %v70, 1.0
    %v73 = vrsqrt.pop %v71
    %v74 = vrsqrt.pop %v72
    %v75 = vld [vmem:[%s0] sm:$0xff]
    %v76 = vld [vmem:[%s0 + $0x8] sm:$0xff]
    %v77 = vmul.f32 %v75, %v73
    %v78 = vmul.f32 %v76, %v74
    %v80 = vsel %vm64, %v62, 0
    %v83 = vsel %vm64, %v63, 0
    %85 = vmatprep.subr.mxu0 0.0
    %86 = vmatpush1.msra.mxu0 0.0
    %87 = vmatprep.subr.mxu0 0.0
    %88 = vmatpush1.msra.mxu0 0.0
    %89 = vmatprep.subr.mxu0 0.0
    %90 = vmatpush1.msra.mxu0 0.0
    %91 = vmatprep.subr.mxu0 0.0
    %92 = vmatpush1.msra.mxu0 0.0
    %93 = vmatprep.subr.mxu0 0.0
    %94 = vmatpush1.msra.mxu0 0.0
    %95 = vmatprep.subr.mxu0 0.0
    %96 = vmatpush1.msra.mxu0 0.0
    %97 = vmatprep.subr.mxu0 0.0
    %98 = vmatpush1.msra.mxu0 0.0
    %99 = vmatprep.subr.mxu0 0.0
    %100 = vmatpush1.msra.mxu0 0.0
    %101 = vmatprep.subr.mxu0 0.0
    %102 = vmatpush1.msra.mxu0 0.0
    %103 = vmatprep.subr.mxu0 0.0
    %104 = vmatpush1.msra.mxu0 0.0
    %105 = vmatprep.subr.mxu0 0.0
    %106 = vmatpush1.msra.mxu0 0.0
    %107 = vmatprep.subr.mxu0 0.0
    %108 = vmatpush1.msra.mxu0 0.0
    %109 = vmatprep.subr.mxu0 0.0
    %110 = vmatpush1.msra.mxu0 0.0
    %111 = vmatprep.subr.mxu0 0.0
    %112 = vmatpush1.msra.mxu0 0.0
    %113 = vmatprep.subr.mxu0 0.0
    %114 = vmatpush1.msra.mxu0 %v78
    %115 = vmatprep.subr.mxu0 0.0
    %116 = vmatpush1.msra.mxu0 %v77
    %117 = vmatprep.subr.mxu0 0.0
    %118 = vmatpush2.msra.mxu0 0.0
    %119 = vmatprep.subr.mxu0 0.0
    %120 = vmatpush2.msra.mxu0 0.0
    %121 = vmatprep.subr.mxu0 0.0
    %122 = vmatpush2.msra.mxu0 0.0
    %123 = vmatprep.subr.mxu0 0.0
    %124 = vmatpush2.msra.mxu0 0.0
    %125 = vmatprep.subr.mxu0 0.0
    %126 = vmatpush2.msra.mxu0 0.0
    %127 = vmatprep.subr.mxu0 0.0
    %128 = vmatpush2.msra.mxu0 0.0
    %129 = vmatprep.subr.mxu0 0.0
    %130 = vmatpush2.msra.mxu0 0.0
    %131 = vmatprep.subr.mxu0 0.0
    %132 = vmatpush2.msra.mxu0 0.0
    %133 = vmatprep.subr.mxu0 0.0
    %134 = vmatpush2.msra.mxu0 0.0
    %135 = vmatprep.subr.mxu0 0.0
    %136 = vmatpush2.msra.mxu0 0.0
    %137 = vmatprep.subr.mxu0 0.0
    %138 = vmatpush2.msra.mxu0 0.0
    %139 = vmatprep.subr.mxu0 0.0
    %140 = vmatpush2.msra.mxu0 0.0
    %141 = vmatprep.subr.mxu0 0.0
    %142 = vmatpush2.msra.mxu0 0.0
    %143 = vmatprep.subr.mxu0 0.0
    %144 = vmatpush2.msra.mxu0 0.0
    %145 = vmatprep.subr.mxu0 0.0
    %146 = vmatpush2.msra.mxu0 0.0
    %147 = vmatprep.subr.mxu0 0.0
    %148 = vmatpush2.msra.mxu0 0.0
    %149 = vmatprep.mubr.f32.mxu0 0.0
    %150 = vmatmul.mubr.f32.gmra.mxu0 %v80
    %v151 = vpop.f32.mrf.mxu0
    %v152 = vadd.f32 %v77, %v151
    %v153 = vpop.f32.mrf.mxu0
    %154 = vmatprep.mubr.f32.mxu0 0.0
    %155 = vmatmul.mubr.f32.gmra.mxu0 %v83
    %v156 = vpop.f32.mrf.mxu0
    %v157 = vadd.f32 %v78, %v156
    %v158 = vpop.f32.mrf.mxu0
    %159 = vdwg.mxu0
    %v160 = vmul.f32 %v73, %v152
    %v161 = vmul.f32 %v74, %v157
    %s162 = scalar_lea.vmem %s1, 16
    %v163 = vld [vmem:[%s162] sm:$0xff]
    %v164 = vld [vmem:[%s162 + $0x8] sm:$0xff]
    %v165 = vsel %vm64, %v163, 0.0
    %166 = vadd.xlane.f32.xlu0 %v165
    %v167 = vpop.xlane.xlu0 %166
    %v168 = vsel %vm64, %v164, 0.0
    %169 = vadd.xlane.f32.xlu0 %v168
    %v170 = vpop.xlane.xlu0 %169
    %v171 = vadd.f32 %v167, 1.0
    %v172 = vadd.f32 %v170, 1.0
    %v173 = vrsqrt.pop %v171
    %v174 = vrsqrt.pop %v172
    %s175 = scalar_lea.vmem %s0, 16
    %v176 = vld [vmem:[%s175] sm:$0xff]
    %v177 = vld [vmem:[%s175 + $0x8] sm:$0xff]
    %v178 = vmul.f32 %v176, %v173
    %v179 = vmul.f32 %v177, %v174
    %v181 = vsel %vm64, %v163, 0
    %v184 = vsel %vm64, %v164, 0
    %186 = vmatprep.subr.mxu0 0.0
    %187 = vmatpush1.msra.mxu0 0.0
    %188 = vmatprep.subr.mxu0 0.0
    %189 = vmatpush1.msra.mxu0 0.0
    %190 = vmatprep.subr.mxu0 0.0
    %191 = vmatpush1.msra.mxu0 0.0
    %192 = vmatprep.subr.mxu0 0.0
    %193 = vmatpush1.msra.mxu0 0.0
    %194 = vmatprep.subr.mxu0 0.0
    %195 = vmatpush1.msra.mxu0 0.0
    %196 = vmatprep.subr.mxu0 0.0
    %197 = vmatpush1.msra.mxu0 0.0
    %198 = vmatprep.subr.mxu0 0.0
    %199 = vmatpush1.msra.mxu0 0.0
    %200 = vmatprep.subr.mxu0 0.0
    %201 = vmatpush1.msra.mxu0 0.0
    %202 = vmatprep.subr.mxu0 0.0
    %203 = vmatpush1.msra.mxu0 0.0
    %204 = vmatprep.subr.mxu0 0.0
    %205 = vmatpush1.msra.mxu0 0.0
    %206 = vmatprep.subr.mxu0 0.0
    %207 = vmatpush1.msra.mxu0 0.0
    %208 = vmatprep.subr.mxu0 0.0
    %209 = vmatpush1.msra.mxu0 0.0
    %210 = vmatprep.subr.mxu0 0.0
    %211 = vmatpush1.msra.mxu0 0.0
    %212 = vmatprep.subr.mxu0 0.0
    %213 = vmatpush1.msra.mxu0 0.0
    %214 = vmatprep.subr.mxu0 0.0
    %215 = vmatpush1.msra.mxu0 %v179
    %216 = vmatprep.subr.mxu0 0.0
    %217 = vmatpush1.msra.mxu0 %v178
    %218 = vmatprep.subr.mxu0 0.0
    %219 = vmatpush2.msra.mxu0 0.0
    %220 = vmatprep.subr.mxu0 0.0
    %221 = vmatpush2.msra.mxu0 0.0
    %222 = vmatprep.subr.mxu0 0.0
    %223 = vmatpush2.msra.mxu0 0.0
    %224 = vmatprep.subr.mxu0 0.0
    %225 = vmatpush2.msra.mxu0 0.0
    %226 = vmatprep.subr.mxu0 0.0
    %227 = vmatpush2.msra.mxu0 0.0
    %228 = vmatprep.subr.mxu0 0.0
    %229 = vmatpush2.msra.mxu0 0.0
    %230 = vmatprep.subr.mxu0 0.0
    %231 = vmatpush2.msra.mxu0 0.0
    %232 = vmatprep.subr.mxu0 0.0
    %233 = vmatpush2.msra.mxu0 0.0
    %234 = vmatprep.subr.mxu0 0.0
    %235 = vmatpush2.msra.mxu0 0.0
    %236 = vmatprep.subr.mxu0 0.0
    %237 = vmatpush2.msra.mxu0 0.0
    %238 = vmatprep.subr.mxu0 0.0
    %239 = vmatpush2.msra.mxu0 0.0
    %240 = vmatprep.subr.mxu0 0.0
    %241 = vmatpush2.msra.mxu0 0.0
    %242 = vmatprep.subr.mxu0 0.0
    %243 = vmatpush2.msra.mxu0 0.0
    %244 = vmatprep.subr.mxu0 0.0
    %245 = vmatpush2.msra.mxu0 0.0
    %246 = vmatprep.subr.mxu0 0.0
    %247 = vmatpush2.msra.mxu0 0.0
    %248 = vmatprep.subr.mxu0 0.0
    %249 = vmatpush2.msra.mxu0 0.0
    %250 = vmatprep.mubr.f32.mxu0 0.0
    %251 = vmatmul.mubr.f32.gmra.mxu0 %v181
    %v252 = vpop.f32.mrf.mxu0
    %v253 = vadd.f32 %v178, %v252
    %v254 = vpop.f32.mrf.mxu0
    %255 = vmatprep.mubr.f32.mxu0 0.0
    %256 = vmatmul.mubr.f32.gmra.mxu0 %v184
    %v257 = vpop.f32.mrf.mxu0
    %v258 = vadd.f32 %v179, %v257
    %v259 = vpop.f32.mrf.mxu0
    %260 = vdwg.mxu0
    %v261 = vmul.f32 %v173, %v253
    %v262 = vmul.f32 %v174, %v258
    %v263 = vlaneseq
    %v264 = vshrl.u32 %v263, 7
    %v265 = vsub.s32 0, %v264
    %v266 = vrot.slane %v49, %v265
    %vm267 = vcmask 31744
    %v269 = vsel %vm267, %v160, 0
    %v272 = vsel %vm267, %v161, 0
    %v275 = vsel %vm267, %v261, 0
    %v278 = vsel %vm267, %v262, 0
    %vm280 = vcmask 1043456
    %v282 = vsel %vm280, %v32, 0
    %284 = vmatprep.subr.mxu0 0.0
    %285 = vmatpush1.msra.mxu0 0.0
    %286 = vmatprep.subr.mxu0 0.0
    %287 = vmatpush1.msra.mxu0 0.0
    %288 = vmatprep.subr.mxu0 0.0
    %289 = vmatpush1.msra.mxu0 0.0
    %290 = vmatprep.subr.mxu0 0.0
    %291 = vmatpush1.msra.mxu0 0.0
    %292 = vmatprep.subr.mxu0 0.0
    %293 = vmatpush1.msra.mxu0 0.0
    %294 = vmatprep.subr.mxu0 0.0
    %295 = vmatpush1.msra.mxu0 0.0
    %296 = vmatprep.subr.mxu0 0.0
    %297 = vmatpush1.msra.mxu0 0.0
    %298 = vmatprep.subr.mxu0 0.0
    %299 = vmatpush1.msra.mxu0 0.0
    %300 = vmatprep.subr.mxu0 0.0
    %301 = vmatpush1.msra.mxu0 0.0
    %302 = vmatprep.subr.mxu0 0.0
    %303 = vmatpush1.msra.mxu0 0.0
    %304 = vmatprep.subr.mxu0 0.0
    %305 = vmatpush1.msra.mxu0 0.0
    %306 = vmatprep.subr.mxu0 0.0
    %307 = vmatpush1.msra.mxu0 0.0
    %308 = vmatprep.subr.mxu0 0.0
    %309 = vmatpush1.msra.mxu0 0.0
    %310 = vmatprep.subr.mxu0 0.0
    %311 = vmatpush1.msra.mxu0 0.0
    %312 = vmatprep.subr.mxu0 0.0
    %313 = vmatpush1.msra.mxu0 0.0
    %314 = vmatprep.subr.mxu0 0.0
    %315 = vmatpush1.msra.mxu0 %v282
    %316 = vmatprep.subr.mxu0 0.0
    %317 = vmatpush2.msra.mxu0 0.0
    %318 = vmatprep.subr.mxu0 0.0
    %319 = vmatpush2.msra.mxu0 0.0
    %320 = vmatprep.subr.mxu0 0.0
    %321 = vmatpush2.msra.mxu0 0.0
    %322 = vmatprep.subr.mxu0 0.0
    %323 = vmatpush2.msra.mxu0 0.0
    %324 = vmatprep.subr.mxu0 0.0
    %325 = vmatpush2.msra.mxu0 0.0
    %326 = vmatprep.subr.mxu0 0.0
    %327 = vmatpush2.msra.mxu0 0.0
    %328 = vmatprep.subr.mxu0 0.0
    %329 = vmatpush2.msra.mxu0 0.0
    %330 = vmatprep.subr.mxu0 0.0
    %331 = vmatpush2.msra.mxu0 0.0
    %332 = vmatprep.subr.mxu0 0.0
    %333 = vmatpush2.msra.mxu0 0.0
    %334 = vmatprep.subr.mxu0 0.0
    %335 = vmatpush2.msra.mxu0 0.0
    %336 = vmatprep.subr.mxu0 0.0
    %337 = vmatpush2.msra.mxu0 0.0
    %338 = vmatprep.subr.mxu0 0.0
    %339 = vmatpush2.msra.mxu0 0.0
    %340 = vmatprep.subr.mxu0 0.0
    %341 = vmatpush2.msra.mxu0 0.0
    %342 = vmatprep.subr.mxu0 0.0
    %343 = vmatpush2.msra.mxu0 0.0
    %344 = vmatprep.subr.mxu0 0.0
    %345 = vmatpush2.msra.mxu0 0.0
    %346 = vmatprep.subr.mxu0 0.0
    %347 = vmatpush2.msra.mxu0 0.0
    %348 = vmatprep.mubr.f32.mxu0 0.0
    %349 = vmatmul.mubr.f32.gmra.mxu0 %v269
    %v350 = vpop.f32.mrf.mxu0
    %v351 = vadd.f32 %v266, %v350
    %v352 = vpop.f32.mrf.mxu0
    %353 = vmatprep.mubr.f32.mxu0 0.0
    %354 = vmatmul.mubr.f32.gmra.mxu0 %v272
    %v355 = vpop.f32.mrf.mxu0
    %v356 = vadd.f32 %v266, %v355
    %v357 = vpop.f32.mrf.mxu0
    %358 = vmatprep.mubr.f32.mxu0 0.0
    %359 = vmatmul.mubr.f32.gmra.mxu0 %v275
    %v360 = vpop.f32.mrf.mxu0
    %v361 = vadd.f32 %v266, %v360
    %v362 = vpop.f32.mrf.mxu0
    %363 = vmatprep.mubr.f32.mxu0 0.0
    %364 = vmatmul.mubr.f32.gmra.mxu0 %v278
    %v365 = vpop.f32.mrf.mxu0
    %v366 = vadd.f32 %v266, %v365
    %v367 = vpop.f32.mrf.mxu0
    %368 = vdwg.mxu0
    %v369 = vmax.f32 %v351, 0.0
    %v370 = vmax.f32 %v356, 0.0
    %v371 = vmax.f32 %v361, 0.0
    %v372 = vmax.f32 %v366, 0.0
    %v373 = vlaneseq
    %v374 = vshrl.u32 %v373, 7
    %v375 = vsub.s32 0, %v374
    %v376 = vrot.slane %v50, %v375
    %vm377 = vcmask 261120
    %v379 = vsel %vm377, %v369, 0
    %v382 = vsel %vm377, %v370, 0
    %v385 = vsel %vm377, %v371, 0
    %v388 = vsel %vm377, %v372, 0
    %390 = vmatprep.subr.mxu0 0.0
    %391 = vmatpush1.msra.mxu0 0.0
    %392 = vmatprep.subr.mxu0 0.0
    %393 = vmatpush1.msra.mxu0 0.0
    %394 = vmatprep.subr.mxu0 0.0
    %395 = vmatpush1.msra.mxu0 0.0
    %396 = vmatprep.subr.mxu0 0.0
    %397 = vmatpush1.msra.mxu0 0.0
    %398 = vmatprep.subr.mxu0 0.0
    %399 = vmatpush1.msra.mxu0 0.0
    %400 = vmatprep.subr.mxu0 0.0
    %401 = vmatpush1.msra.mxu0 0.0
    %402 = vmatprep.subr.mxu0 0.0
    %403 = vmatpush1.msra.mxu0 0.0
    %404 = vmatprep.subr.mxu0 0.0
    %405 = vmatpush1.msra.mxu0 0.0
    %406 = vmatprep.subr.mxu0 0.0
    %407 = vmatpush1.msra.mxu0 0.0
    %408 = vmatprep.subr.mxu0 0.0
    %409 = vmatpush1.msra.mxu0 0.0
    %410 = vmatprep.subr.mxu0 0.0
    %411 = vmatpush1.msra.mxu0 0.0
    %412 = vmatprep.subr.mxu0 0.0
    %413 = vmatpush1.msra.mxu0 0.0
    %414 = vmatprep.subr.mxu0 0.0
    %415 = vmatpush1.msra.mxu0 %v36
    %416 = vmatprep.subr.mxu0 0.0
    %417 = vmatpush1.msra.mxu0 %v35
    %418 = vmatprep.subr.mxu0 0.0
    %419 = vmatpush1.msra.mxu0 %v34
    %420 = vmatprep.subr.mxu0 0.0
    %421 = vmatpush1.msra.mxu0 %v33
    %422 = vmatprep.subr.mxu0 0.0
    %423 = vmatpush2.msra.mxu0 0.0
    %424 = vmatprep.subr.mxu0 0.0
    %425 = vmatpush2.msra.mxu0 0.0
    %426 = vmatprep.subr.mxu0 0.0
    %427 = vmatpush2.msra.mxu0 0.0
    %428 = vmatprep.subr.mxu0 0.0
    %429 = vmatpush2.msra.mxu0 0.0
    %430 = vmatprep.subr.mxu0 0.0
    %431 = vmatpush2.msra.mxu0 0.0
    %432 = vmatprep.subr.mxu0 0.0
    %433 = vmatpush2.msra.mxu0 0.0
    %434 = vmatprep.subr.mxu0 0.0
    %435 = vmatpush2.msra.mxu0 0.0
    %436 = vmatprep.subr.mxu0 0.0
    %437 = vmatpush2.msra.mxu0 0.0
    %438 = vmatprep.subr.mxu0 0.0
    %439 = vmatpush2.msra.mxu0 0.0
    %440 = vmatprep.subr.mxu0 0.0
    %441 = vmatpush2.msra.mxu0 0.0
    %442 = vmatprep.subr.mxu0 0.0
    %443 = vmatpush2.msra.mxu0 0.0
    %444 = vmatprep.subr.mxu0 0.0
    %445 = vmatpush2.msra.mxu0 0.0
    %446 = vmatprep.subr.mxu0 0.0
    %447 = vmatpush2.msra.mxu0 0.0
    %448 = vmatprep.subr.mxu0 0.0
    %449 = vmatpush2.msra.mxu0 0.0
    %450 = vmatprep.subr.mxu0 0.0
    %451 = vmatpush2.msra.mxu0 0.0
    %452 = vmatprep.subr.mxu0 0.0
    %453 = vmatpush2.msra.mxu0 0.0
    %454 = vmatprep.mubr.f32.mxu0 0.0
    %455 = vmatmul.mubr.f32.gmra.mxu0 %v379
    %v456 = vpop.f32.mrf.mxu0
    %v457 = vadd.f32 %v376, %v456
    %v458 = vpop.f32.mrf.mxu0
    %459 = vmatprep.mubr.f32.mxu0 0.0
    %460 = vmatmul.mubr.f32.gmra.mxu0 %v382
    %v461 = vpop.f32.mrf.mxu0
    %v462 = vadd.f32 %v376, %v461
    %v463 = vpop.f32.mrf.mxu0
    %464 = vmatprep.mubr.f32.mxu0 0.0
    %465 = vmatmul.mubr.f32.gmra.mxu0 %v385
    %v466 = vpop.f32.mrf.mxu0
    %v467 = vadd.f32 %v376, %v466
    %v468 = vpop.f32.mrf.mxu0
    %469 = vmatprep.mubr.f32.mxu0 0.0
    %470 = vmatmul.mubr.f32.gmra.mxu0 %v388
    %v471 = vpop.f32.mrf.mxu0
    %v472 = vadd.f32 %v376, %v471
    %v473 = vpop.f32.mrf.mxu0
    %474 = vdwg.mxu0
    %v475 = vlaneseq
    %v476 = vshrl.u32 %v475, 7
    %v477 = vsub.s32 0, %v476
    %v478 = vrot.slane %v51, %v477
    %v480 = vsel %vm377, %v457, 0
    %v483 = vsel %vm377, %v462, 0
    %v486 = vsel %vm377, %v467, 0
    %v489 = vsel %vm377, %v472, 0
    %491 = vmatprep.subr.mxu0 0.0
    %492 = vmatpush1.msra.mxu0 0.0
    %493 = vmatprep.subr.mxu0 0.0
    %494 = vmatpush1.msra.mxu0 0.0
    %495 = vmatprep.subr.mxu0 0.0
    %496 = vmatpush1.msra.mxu0 0.0
    %497 = vmatprep.subr.mxu0 0.0
    %498 = vmatpush1.msra.mxu0 0.0
    %499 = vmatprep.subr.mxu0 0.0
    %500 = vmatpush1.msra.mxu0 0.0
    %501 = vmatprep.subr.mxu0 0.0
    %502 = vmatpush1.msra.mxu0 0.0
    %503 = vmatprep.subr.mxu0 0.0
    %504 = vmatpush1.msra.mxu0 0.0
    %505 = vmatprep.subr.mxu0 0.0
    %506 = vmatpush1.msra.mxu0 0.0
    %507 = vmatprep.subr.mxu0 0.0
    %508 = vmatpush1.msra.mxu0 0.0
    %509 = vmatprep.subr.mxu0 0.0
    %510 = vmatpush1.msra.mxu0 0.0
    %511 = vmatprep.subr.mxu0 0.0
    %512 = vmatpush1.msra.mxu0 0.0
    %513 = vmatprep.subr.mxu0 0.0
    %514 = vmatpush1.msra.mxu0 0.0
    %515 = vmatprep.subr.mxu0 0.0
    %516 = vmatpush1.msra.mxu0 %v40
    %517 = vmatprep.subr.mxu0 0.0
    %518 = vmatpush1.msra.mxu0 %v39
    %519 = vmatprep.subr.mxu0 0.0
    %520 = vmatpush1.msra.mxu0 %v38
    %521 = vmatprep.subr.mxu0 0.0
    %522 = vmatpush1.msra.mxu0 %v37
    %523 = vmatprep.subr.mxu0 0.0
    %524 = vmatpush2.msra.mxu0 0.0
    %525 = vmatprep.subr.mxu0 0.0
    %526 = vmatpush2.msra.mxu0 0.0
    %527 = vmatprep.subr.mxu0 0.0
    %528 = vmatpush2.msra.mxu0 0.0
    %529 = vmatprep.subr.mxu0 0.0
    %530 = vmatpush2.msra.mxu0 0.0
    %531 = vmatprep.subr.mxu0 0.0
    %532 = vmatpush2.msra.mxu0 0.0
    %533 = vmatprep.subr.mxu0 0.0
    %534 = vmatpush2.msra.mxu0 0.0
    %535 = vmatprep.subr.mxu0 0.0
    %536 = vmatpush2.msra.mxu0 0.0
    %537 = vmatprep.subr.mxu0 0.0
    %538 = vmatpush2.msra.mxu0 0.0
    %539 = vmatprep.subr.mxu0 0.0
    %540 = vmatpush2.msra.mxu0 0.0
    %541 = vmatprep.subr.mxu0 0.0
    %542 = vmatpush2.msra.mxu0 0.0
    %543 = vmatprep.subr.mxu0 0.0
    %544 = vmatpush2.msra.mxu0 0.0
    %545 = vmatprep.subr.mxu0 0.0
    %546 = vmatpush2.msra.mxu0 0.0
    %547 = vmatprep.subr.mxu0 0.0
    %548 = vmatpush2.msra.mxu0 0.0
    %549 = vmatprep.subr.mxu0 0.0
    %550 = vmatpush2.msra.mxu0 0.0
    %551 = vmatprep.subr.mxu0 0.0
    %552 = vmatpush2.msra.mxu0 0.0
    %553 = vmatprep.subr.mxu0 0.0
    %554 = vmatpush2.msra.mxu0 0.0
    %555 = vmatprep.mubr.f32.mxu0 0.0
    %556 = vmatmul.mubr.f32.gmra.mxu0 %v480
    %v557 = vpop.f32.mrf.mxu0
    %v558 = vadd.f32 %v478, %v557
    %v559 = vpop.f32.mrf.mxu0
    %560 = vmatprep.mubr.f32.mxu0 0.0
    %561 = vmatmul.mubr.f32.gmra.mxu0 %v483
    %v562 = vpop.f32.mrf.mxu0
    %v563 = vadd.f32 %v478, %v562
    %v564 = vpop.f32.mrf.mxu0
    %565 = vmatprep.mubr.f32.mxu0 0.0
    %566 = vmatmul.mubr.f32.gmra.mxu0 %v486
    %v567 = vpop.f32.mrf.mxu0
    %v568 = vadd.f32 %v478, %v567
    %v569 = vpop.f32.mrf.mxu0
    %570 = vmatprep.mubr.f32.mxu0 0.0
    %571 = vmatmul.mubr.f32.gmra.mxu0 %v489
    %v572 = vpop.f32.mrf.mxu0
    %v573 = vadd.f32 %v478, %v572
    %v574 = vpop.f32.mrf.mxu0
    %575 = vdwg.mxu0
    %vm576 = vcmask 64512
    %v577 = vsel %vm576, %v558, -inf
    %578 = vmax.xlane.f32.xlu0 %v577
    %v579 = vpop.xlane.xlu0 %578
    %v580 = vsel %vm576, %v563, -inf
    %581 = vmax.xlane.f32.xlu0 %v580
    %v582 = vpop.xlane.xlu0 %581
    %v583 = vsel %vm576, %v568, -inf
    %584 = vmax.xlane.f32.xlu0 %v583
    %v585 = vpop.xlane.xlu0 %584
    %v586 = vsel %vm576, %v573, -inf
    %587 = vmax.xlane.f32.xlu0 %v586
    %v588 = vpop.xlane.xlu0 %587
    %v589 = vsub.f32 %v558, %v579
    %v590 = vsub.f32 %v563, %v582
    %v591 = vsub.f32 %v568, %v585
    %v592 = vsub.f32 %v573, %v588
    %v593 = vmul.f32 %v589, 1.442695
    %v594 = vpow.pop %v593
    %v595 = vmul.f32 %v590, 1.442695
    %v596 = vpow.pop %v595
    %v597 = vmul.f32 %v591, 1.442695
    %v598 = vpow.pop %v597
    %v599 = vmul.f32 %v592, 1.442695
    %v600 = vpow.pop %v599
    %v601 = vsel %vm576, %v594, 0.0
    %602 = vadd.xlane.f32.xlu0 %v601
    %v603 = vpop.xlane.xlu0 %602
    %v604 = vsel %vm576, %v596, 0.0
    %605 = vadd.xlane.f32.xlu0 %v604
    %v606 = vpop.xlane.xlu0 %605
    %v607 = vsel %vm576, %v598, 0.0
    %608 = vadd.xlane.f32.xlu0 %v607
    %v609 = vpop.xlane.xlu0 %608
    %v610 = vsel %vm576, %v600, 0.0
    %611 = vadd.xlane.f32.xlu0 %v610
    %v612 = vpop.xlane.xlu0 %611
    %v613 = vrcp.pop %v603
    %v614 = vrcp.pop %v606
    %v615 = vrcp.pop %v609
    %v616 = vrcp.pop %v612
    %v617 = vmul.f32 %v594, %v613
    %v618 = vmul.f32 %v596, %v614
    %v619 = vmul.f32 %v598, %v615
    %v620 = vmul.f32 %v600, %v616
    %621 = vxpose.xlu0.b32.start [1/16] %v617, 128
    %622 = vxpose.xlu0.b32.cont [2/16] %v618, 128
    %623 = vxpose.xlu0.b32.cont [3/16] 0.0, 128
    %624 = vxpose.xlu0.b32.cont [4/16] 0.0, 128
    %625 = vxpose.xlu0.b32.cont [5/16] 0.0, 128
    %626 = vxpose.xlu0.b32.cont [6/16] 0.0, 128
    %627 = vxpose.xlu0.b32.cont [7/16] 0.0, 128
    %628 = vxpose.xlu0.b32.cont [8/16] 0.0, 128
    %629 = vxpose.xlu0.b32.cont [9/16] 0.0, 128
    %630 = vxpose.xlu0.b32.cont [10/16] 0.0, 128
    %631 = vxpose.xlu0.b32.cont [11/16] 0.0, 128
    %632 = vxpose.xlu0.b32.cont [12/16] 0.0, 128
    %633 = vxpose.xlu0.b32.cont [13/16] 0.0, 128
    %634 = vxpose.xlu0.b32.cont [14/16] 0.0, 128
    %635 = vxpose.xlu0.b32.cont [15/16] 0.0, 128
    %636 = vxpose.xlu0.b32.end [16/16] 0.0, 128
    %v637 = vpop.trf.xlu0
    %v638 = vpop.trf.xlu0
    %v639 = vpop.trf.xlu0
    %v640 = vpop.trf.xlu0
    %v641 = vpop.trf.xlu0
    %v642 = vpop.trf.xlu0
    %v643 = vpop.trf.xlu0
    %v644 = vpop.trf.xlu0
    %v645 = vpop.trf.xlu0
    %v646 = vpop.trf.xlu0
    %v647 = vpop.trf.xlu0
    %v648 = vpop.trf.xlu0
    %v649 = vpop.trf.xlu0
    %v650 = vpop.trf.xlu0
    %v651 = vpop.trf.xlu0
    %v652 = vpop.trf.xlu0
    %v654 = vsel %vm64, %v637, 0
    %656 = vmatprep.subr.mxu0 0.0
    %657 = vmatpush1.msra.mxu0 0.0
    %658 = vmatprep.subr.mxu0 0.0
    %659 = vmatpush1.msra.mxu0 0.0
    %660 = vmatprep.subr.mxu0 0.0
    %661 = vmatpush1.msra.mxu0 0.0
    %662 = vmatprep.subr.mxu0 0.0
    %663 = vmatpush1.msra.mxu0 0.0
    %664 = vmatprep.subr.mxu0 0.0
    %665 = vmatpush1.msra.mxu0 0.0
    %666 = vmatprep.subr.mxu0 0.0
    %667 = vmatpush1.msra.mxu0 0.0
    %668 = vmatprep.subr.mxu0 0.0
    %669 = vmatpush1.msra.mxu0 0.0
    %670 = vmatprep.subr.mxu0 0.0
    %671 = vmatpush1.msra.mxu0 0.0
    %672 = vmatprep.subr.mxu0 0.0
    %673 = vmatpush1.msra.mxu0 0.0
    %674 = vmatprep.subr.mxu0 0.0
    %675 = vmatpush1.msra.mxu0 0.0
    %676 = vmatprep.subr.mxu0 0.0
    %677 = vmatpush1.msra.mxu0 0.0
    %678 = vmatprep.subr.mxu0 0.0
    %679 = vmatpush1.msra.mxu0 0.0
    %680 = vmatprep.subr.mxu0 0.0
    %681 = vmatpush1.msra.mxu0 0.0
    %682 = vmatprep.subr.mxu0 0.0
    %683 = vmatpush1.msra.mxu0 0.0
    %684 = vmatprep.subr.mxu0 0.0
    %685 = vmatpush1.msra.mxu0 %v370
    %686 = vmatprep.subr.mxu0 0.0
    %687 = vmatpush1.msra.mxu0 %v369
    %688 = vmatprep.subr.mxu0 0.0
    %689 = vmatpush2.msra.mxu0 0.0
    %690 = vmatprep.subr.mxu0 0.0
    %691 = vmatpush2.msra.mxu0 0.0
    %692 = vmatprep.subr.mxu0 0.0
    %693 = vmatpush2.msra.mxu0 0.0
    %694 = vmatprep.subr.mxu0 0.0
    %695 = vmatpush2.msra.mxu0 0.0
    %696 = vmatprep.subr.mxu0 0.0
    %697 = vmatpush2.msra.mxu0 0.0
    %698 = vmatprep.subr.mxu0 0.0
    %699 = vmatpush2.msra.mxu0 0.0
    %700 = vmatprep.subr.mxu0 0.0
    %701 = vmatpush2.msra.mxu0 0.0
    %702 = vmatprep.subr.mxu0 0.0
    %703 = vmatpush2.msra.mxu0 0.0
    %704 = vmatprep.subr.mxu0 0.0
    %705 = vmatpush2.msra.mxu0 0.0
    %706 = vmatprep.subr.mxu0 0.0
    %707 = vmatpush2.msra.mxu0 0.0
    %708 = vmatprep.subr.mxu0 0.0
    %709 = vmatpush2.msra.mxu0 0.0
    %710 = vmatprep.subr.mxu0 0.0
    %711 = vmatpush2.msra.mxu0 0.0
    %712 = vmatprep.subr.mxu0 0.0
    %713 = vmatpush2.msra.mxu0 0.0
    %714 = vmatprep.subr.mxu0 0.0
    %715 = vmatpush2.msra.mxu0 0.0
    %716 = vmatprep.subr.mxu0 0.0
    %717 = vmatpush2.msra.mxu0 0.0
    %718 = vmatprep.subr.mxu0 0.0
    %719 = vmatpush2.msra.mxu0 0.0
    %720 = vmatprep.mubr.f32.mxu0 0.0
    %721 = vmatmul.mubr.f32.gmra.mxu0 %v654
    %v722 = vpop.f32.mrf.mxu0
    %v723 = vadd.f32 0.0, %v722
    %v724 = vpop.f32.mrf.mxu0
    %725 = vdwg.mxu0
    %vm726 = vcmp.gt.f32.partialorder %v723, 0.0
    %v727 = vmul.f32 %v723, 1.442695
    %v728 = vpow.pop %v727
    %v729 = vsub.f32 %v728, 1.0
    %v730 = vmul.f32 %v729, 1.6732632
    %v731 = vsel %vm726, %v723, %v730
    %v732 = vmul.f32 %v731, 1.050701
    %733 = vmatprep.subr.mxu0 0.0
    %734 = vmatpush1.msra.mxu0 0.0
    %735 = vmatprep.subr.mxu0 0.0
    %736 = vmatpush1.msra.mxu0 0.0
    %737 = vmatprep.subr.mxu0 0.0
    %738 = vmatpush1.msra.mxu0 0.0
    %739 = vmatprep.subr.mxu0 0.0
    %740 = vmatpush1.msra.mxu0 0.0
    %741 = vmatprep.subr.mxu0 0.0
    %742 = vmatpush1.msra.mxu0 0.0
    %743 = vmatprep.subr.mxu0 0.0
    %744 = vmatpush1.msra.mxu0 0.0
    %745 = vmatprep.subr.mxu0 0.0
    %746 = vmatpush1.msra.mxu0 0.0
    %747 = vmatprep.subr.mxu0 0.0
    %748 = vmatpush1.msra.mxu0 0.0
    %749 = vmatprep.subr.mxu0 0.0
    %750 = vmatpush1.msra.mxu0 0.0
    %751 = vmatprep.subr.mxu0 0.0
    %752 = vmatpush1.msra.mxu0 0.0
    %753 = vmatprep.subr.mxu0 0.0
    %754 = vmatpush1.msra.mxu0 0.0
    %755 = vmatprep.subr.mxu0 0.0
    %756 = vmatpush1.msra.mxu0 0.0
    %757 = vmatprep.subr.mxu0 0.0
    %758 = vmatpush1.msra.mxu0 0.0
    %759 = vmatprep.subr.mxu0 0.0
    %760 = vmatpush1.msra.mxu0 0.0
    %761 = vmatprep.subr.mxu0 0.0
    %762 = vmatpush1.msra.mxu0 %v618
    %763 = vmatprep.subr.mxu0 0.0
    %764 = vmatpush1.msra.mxu0 %v617
    %765 = vmatprep.subr.mxu0 0.0
    %766 = vmatpush2.msra.mxu0 0.0
    %767 = vmatprep.subr.mxu0 0.0
    %768 = vmatpush2.msra.mxu0 0.0
    %769 = vmatprep.subr.mxu0 0.0
    %770 = vmatpush2.msra.mxu0 0.0
    %771 = vmatprep.subr.mxu0 0.0
    %772 = vmatpush2.msra.mxu0 0.0
    %773 = vmatprep.subr.mxu0 0.0
    %774 = vmatpush2.msra.mxu0 0.0
    %775 = vmatprep.subr.mxu0 0.0
    %776 = vmatpush2.msra.mxu0 0.0
    %777 = vmatprep.subr.mxu0 0.0
    %778 = vmatpush2.msra.mxu0 0.0
    %779 = vmatprep.subr.mxu0 0.0
    %780 = vmatpush2.msra.mxu0 0.0
    %781 = vmatprep.subr.mxu0 0.0
    %782 = vmatpush2.msra.mxu0 0.0
    %783 = vmatprep.subr.mxu0 0.0
    %784 = vmatpush2.msra.mxu0 0.0
    %785 = vmatprep.subr.mxu0 0.0
    %786 = vmatpush2.msra.mxu0 0.0
    %787 = vmatprep.subr.mxu0 0.0
    %788 = vmatpush2.msra.mxu0 0.0
    %789 = vmatprep.subr.mxu0 0.0
    %790 = vmatpush2.msra.mxu0 0.0
    %791 = vmatprep.subr.mxu0 0.0
    %792 = vmatpush2.msra.mxu0 0.0
    %793 = vmatprep.subr.mxu0 0.0
    %794 = vmatpush2.msra.mxu0 0.0
    %795 = vmatprep.subr.mxu0 0.0
    %796 = vmatpush2.msra.mxu0 0.0
    %797 = vmatprep.mubr.f32.mxu0 0.0
    %798 = vmatmul.mubr.f32.gmra.mxu0 %v80
    %v799 = vpop.f32.mrf.mxu0
    %v800 = vadd.f32 0.0, %v799
    %v801 = vpop.f32.mrf.mxu0
    %802 = vmatprep.mubr.f32.mxu0 0.0
    %803 = vmatmul.mubr.f32.gmra.mxu0 %v83
    %v804 = vpop.f32.mrf.mxu0
    %v805 = vadd.f32 0.0, %v804
    %v806 = vpop.f32.mrf.mxu0
    %807 = vdwg.mxu0
    %808 = vmatprep.subr.mxu0 0.0
    %809 = vmatpush1.msra.mxu0 0.0
    %810 = vmatprep.subr.mxu0 0.0
    %811 = vmatpush1.msra.mxu0 0.0
    %812 = vmatprep.subr.mxu0 0.0
    %813 = vmatpush1.msra.mxu0 0.0
    %814 = vmatprep.subr.mxu0 0.0
    %815 = vmatpush1.msra.mxu0 0.0
    %816 = vmatprep.subr.mxu0 0.0
    %817 = vmatpush1.msra.mxu0 0.0
    %818 = vmatprep.subr.mxu0 0.0
    %819 = vmatpush1.msra.mxu0 0.0
    %820 = vmatprep.subr.mxu0 0.0
    %821 = vmatpush1.msra.mxu0 0.0
    %822 = vmatprep.subr.mxu0 0.0
    %823 = vmatpush1.msra.mxu0 0.0
    %824 = vmatprep.subr.mxu0 0.0
    %825 = vmatpush1.msra.mxu0 0.0
    %826 = vmatprep.subr.mxu0 0.0
    %827 = vmatpush1.msra.mxu0 0.0
    %828 = vmatprep.subr.mxu0 0.0
    %829 = vmatpush1.msra.mxu0 0.0
    %830 = vmatprep.subr.mxu0 0.0
    %831 = vmatpush1.msra.mxu0 0.0
    %832 = vmatprep.subr.mxu0 0.0
    %833 = vmatpush1.msra.mxu0 0.0
    %834 = vmatprep.subr.mxu0 0.0
    %835 = vmatpush1.msra.mxu0 0.0
    %836 = vmatprep.subr.mxu0 0.0
    %837 = vmatpush1.msra.mxu0 %v805
    %838 = vmatprep.subr.mxu0 0.0
    %839 = vmatpush1.msra.mxu0 %v800
    %840 = vmatprep.subr.mxu0 0.0
    %841 = vmatpush2.msra.mxu0 0.0
    %842 = vmatprep.subr.mxu0 0.0
    %843 = vmatpush2.msra.mxu0 0.0
    %844 = vmatprep.subr.mxu0 0.0
    %845 = vmatpush2.msra.mxu0 0.0
    %846 = vmatprep.subr.mxu0 0.0
    %847 = vmatpush2.msra.mxu0 0.0
    %848 = vmatprep.subr.mxu0 0.0
    %849 = vmatpush2.msra.mxu0 0.0
    %850 = vmatprep.subr.mxu0 0.0
    %851 = vmatpush2.msra.mxu0 0.0
    %852 = vmatprep.subr.mxu0 0.0
    %853 = vmatpush2.msra.mxu0 0.0
    %854 = vmatprep.subr.mxu0 0.0
    %855 = vmatpush2.msra.mxu0 0.0
    %856 = vmatprep.subr.mxu0 0.0
    %857 = vmatpush2.msra.mxu0 0.0
    %858 = vmatprep.subr.mxu0 0.0
    %859 = vmatpush2.msra.mxu0 0.0
    %860 = vmatprep.subr.mxu0 0.0
    %861 = vmatpush2.msra.mxu0 0.0
    %862 = vmatprep.subr.mxu0 0.0
    %863 = vmatpush2.msra.mxu0 0.0
    %864 = vmatprep.subr.mxu0 0.0
    %865 = vmatpush2.msra.mxu0 0.0
    %866 = vmatprep.subr.mxu0 0.0
    %867 = vmatpush2.msra.mxu0 0.0
    %868 = vmatprep.subr.mxu0 0.0
    %869 = vmatpush2.msra.mxu0 0.0
    %870 = vmatprep.subr.mxu0 0.0
    %871 = vmatpush2.msra.mxu0 0.0
    %872 = vmatprep.mubr.f32.mxu0 0.0
    %873 = vmatmul.mubr.f32.gmra.mxu0 %v654
    %v874 = vpop.f32.mrf.mxu0
    %v875 = vadd.f32 0.0, %v874
    %v876 = vpop.f32.mrf.mxu0
    %877 = vdwg.mxu0
    %vm878 = vcmask 7168
    %v879 = vsel %vm878, %v67, 0.0
    %v880 = vsel %vm878, %v70, 0.0
    %v881 = vadd.f32 %v879, %v880
    %882 = vadd.xlane.f32.xlu0 %v881
    %v883 = vpop.xlane.xlu0 %882
    %v884 = vrot.slane %v883, 4
    %v885 = vadd.f32 %v883, %v884
    %v886 = vrot.slane %v885, 2
    %v887 = vadd.f32 %v885, %v886
    %v888 = vrot.slane %v887, 1
    %v889 = vadd.f32 %v887, %v888
    %s890 = vtos %v889
    %v891 = vmul.f32 %v67, %v617
    %v892 = vmul.f32 %v70, %v618
    %v893 = vsel %vm576, %v891, 0.0
    %v894 = vsel %vm576, %v892, 0.0
    %v895 = vadd.f32 %v893, %v894
    %v896 = vrot.slane %v895, 4
    %v897 = vadd.f32 %v895, %v896
    %v898 = vrot.slane %v897, 2
    %v899 = vadd.f32 %v897, %v898
    %v900 = vrot.slane %v899, 1
    %v901 = vadd.f32 %v899, %v900
    %v902 = vmul.f32 %v875, %v59
    %v903 = vsel %vm576, %v902, 0.0
    %904 = vadd.xlane.f32.xlu0 %v903
    %v905 = vpop.xlane.xlu0 %904
    %v906 = vrot.slane %v905, 4
    %v907 = vadd.f32 %v905, %v906
    %v908 = vrot.slane %v907, 2
    %v909 = vadd.f32 %v907, %v908
    %v910 = vrot.slane %v909, 1
    %v911 = vadd.f32 %v909, %v910
    %s912 = vtos %v911
    %v913 = vmul.f32 %v901, %v901
    %vm914 = vcmask 57344
    %v915 = vsel %vm914, %v913, 0.0
    %916 = vadd.xlane.f32.xlu0 %v915
    %v917 = vpop.xlane.xlu0 %916
    %v918 = vrot.slane %v917, 4
    %v919 = vadd.f32 %v917, %v918
    %v920 = vrot.slane %v919, 2
    %v921 = vadd.f32 %v919, %v920
    %v922 = vrot.slane %v921, 1
    %v923 = vadd.f32 %v921, %v922
    %s924 = vtos %v923
    %v925 = vstv %s890
    %v926 = vrcp.pop %v925
    %s927 = vtos %v926
    %s928 = smul.f32 %s924, %s927
    %s929 = ssub.f32 %s912, %s928
    %s930 = ssub.f32 0.0, %s929
    %v931 = vstv %s890
    %v932 = vrcp.pop %v931
    %s933 = vtos %v932
    %s934 = smul.f32 %s930, %s933
    %935 = vmatprep.subr.mxu0 0.0
    %936 = vmatpush1.msra.mxu0 0.0
    %937 = vmatprep.subr.mxu0 0.0
    %938 = vmatpush1.msra.mxu0 0.0
    %939 = vmatprep.subr.mxu0 0.0
    %940 = vmatpush1.msra.mxu0 0.0
    %941 = vmatprep.subr.mxu0 0.0
    %942 = vmatpush1.msra.mxu0 0.0
    %943 = vmatprep.subr.mxu0 0.0
    %944 = vmatpush1.msra.mxu0 0.0
    %945 = vmatprep.subr.mxu0 0.0
    %946 = vmatpush1.msra.mxu0 0.0
    %947 = vmatprep.subr.mxu0 0.0
    %948 = vmatpush1.msra.mxu0 0.0
    %949 = vmatprep.subr.mxu0 0.0
    %950 = vmatpush1.msra.mxu0 0.0
    %951 = vmatprep.subr.mxu0 0.0
    %952 = vmatpush1.msra.mxu0 0.0
    %953 = vmatprep.subr.mxu0 0.0
    %954 = vmatpush1.msra.mxu0 0.0
    %955 = vmatprep.subr.mxu0 0.0
    %956 = vmatpush1.msra.mxu0 0.0
    %957 = vmatprep.subr.mxu0 0.0
    %958 = vmatpush1.msra.mxu0 0.0
    %959 = vmatprep.subr.mxu0 0.0
    %960 = vmatpush1.msra.mxu0 0.0
    %961 = vmatprep.subr.mxu0 0.0
    %962 = vmatpush1.msra.mxu0 0.0
    %963 = vmatprep.subr.mxu0 0.0
    %964 = vmatpush1.msra.mxu0 %v618
    %965 = vmatprep.subr.mxu0 0.0
    %966 = vmatpush1.msra.mxu0 %v617
    %967 = vmatprep.subr.mxu0 0.0
    %968 = vmatpush2.msra.mxu0 0.0
    %969 = vmatprep.subr.mxu0 0.0
    %970 = vmatpush2.msra.mxu0 0.0
    %971 = vmatprep.subr.mxu0 0.0
    %972 = vmatpush2.msra.mxu0 0.0
    %973 = vmatprep.subr.mxu0 0.0
    %974 = vmatpush2.msra.mxu0 0.0
    %975 = vmatprep.subr.mxu0 0.0
    %976 = vmatpush2.msra.mxu0 0.0
    %977 = vmatprep.subr.mxu0 0.0
    %978 = vmatpush2.msra.mxu0 0.0
    %979 = vmatprep.subr.mxu0 0.0
    %980 = vmatpush2.msra.mxu0 0.0
    %981 = vmatprep.subr.mxu0 0.0
    %982 = vmatpush2.msra.mxu0 0.0
    %983 = vmatprep.subr.mxu0 0.0
    %984 = vmatpush2.msra.mxu0 0.0
    %985 = vmatprep.subr.mxu0 0.0
    %986 = vmatpush2.msra.mxu0 0.0
    %987 = vmatprep.subr.mxu0 0.0
    %988 = vmatpush2.msra.mxu0 0.0
    %989 = vmatprep.subr.mxu0 0.0
    %990 = vmatpush2.msra.mxu0 0.0
    %991 = vmatprep.subr.mxu0 0.0
    %992 = vmatpush2.msra.mxu0 0.0
    %993 = vmatprep.subr.mxu0 0.0
    %994 = vmatpush2.msra.mxu0 0.0
    %995 = vmatprep.subr.mxu0 0.0
    %996 = vmatpush2.msra.mxu0 0.0
    %997 = vmatprep.subr.mxu0 0.0
    %998 = vmatpush2.msra.mxu0 0.0
    %999 = vmatprep.mubr.f32.mxu0 0.0
    %1000 = vmatmul.mubr.f32.gmra.mxu0 %v654
    %v1001 = vpop.f32.mrf.mxu0
    %v1002 = vadd.f32 0.0, %v1001
    %v1003 = vpop.f32.mrf.mxu0
    %1004 = vdwg.mxu0
    %v1005 = vmul.f32 %v1002, %v1002
    %v1006 = vsel %vm576, %v1005, 0.0
    %1007 = vadd.xlane.f32.xlu0 %v1006
    %v1008 = vpop.xlane.xlu0 %1007
    %v1009 = vrot.slane %v1008, 4
    %v1010 = vadd.f32 %v1008, %v1009
    %v1011 = vrot.slane %v1010, 2
    %v1012 = vadd.f32 %v1010, %v1011
    %v1013 = vrot.slane %v1012, 1
    %v1014 = vadd.f32 %v1012, %v1013
    %s1015 = vtos %v1014
    %v1016 = vstv %s1015
    %v1017 = vrsqrt.pop %v1016
    %v1018 = vmul.f32 %v1016, %v1017
    %vm1019 = vcmp.eq.f32.partialorder %v1016, inf
    %v1020 = vsel %vm1019, %v1016, %v1018
    %vm1021 = vcmp.eq.f32.partialorder %v1016, 0.0
    %v1022 = vand.u32 %v1016, 2147483648
    %v1023 = vsel %vm1021, %v1022, %v1020
    %s1024 = vtos %v1023
    %v1025 = vstv %s1024
    %v1026 = vrcp.pop %v1025
    %v1027 = vmul.f32 %v1002, %v1026
    %v1028 = vsub.f32 %v1027, %v61
    %v1029 = vmul.f32 %v1028, %v1028
    %v1030 = vsel %vm576, %v1029, 0.0
    %1031 = vadd.xlane.f32.xlu0 %v1030
    %v1032 = vpop.xlane.xlu0 %1031
    %v1033 = vrot.slane %v1032, 4
    %v1034 = vadd.f32 %v1032, %v1033
    %v1035 = vrot.slane %v1034, 2
    %v1036 = vadd.f32 %v1034, %v1035
    %v1037 = vrot.slane %v1036, 1
    %v1038 = vadd.f32 %v1036, %v1037
    %s1039 = vtos %v1038
    %v1040 = vstv %s1039
    %v1041 = vrsqrt.pop %v1040
    %v1042 = vmul.f32 %v1040, %v1041
    %vm1043 = vcmp.eq.f32.partialorder %v1040, inf
    %v1044 = vsel %vm1043, %v1040, %v1042
    %vm1045 = vcmp.eq.f32.partialorder %v1040, 0.0
    %v1046 = vand.u32 %v1040, 2147483648
    %v1047 = vsel %vm1045, %v1046, %v1044
    %s1048 = vtos %v1047
    %v1049 = vsel %vm576, %v617, 0.0
    %v1050 = vsel %vm576, %v618, 0.0
    %v1051 = vadd.f32 %v1049, %v1050
    %v1052 = vrot.slane %v1051, 4
    %v1053 = vadd.f32 %v1051, %v1052
    %v1054 = vrot.slane %v1053, 2
    %v1055 = vadd.f32 %v1053, %v1054
    %v1056 = vrot.slane %v1055, 1
    %v1057 = vadd.f32 %v1055, %v1056
    %v1058 = vmul.f32 %v1057, %v1057
    %v1059 = vsel %vm914, %v1058, 0.0
    %1060 = vadd.xlane.f32.xlu0 %v1059
    %v1061 = vpop.xlane.xlu0 %1060
    %v1062 = vrot.slane %v1061, 4
    %v1063 = vadd.f32 %v1061, %v1062
    %v1064 = vrot.slane %v1063, 2
    %v1065 = vadd.f32 %v1063, %v1064
    %v1066 = vrot.slane %v1065, 1
    %v1067 = vadd.f32 %v1065, %v1066
    %s1068 = vtos %v1067
    %v1069 = vstv %s1068
    %v1070 = vrsqrt.pop %v1069
    %v1071 = vmul.f32 %v1069, %v1070
    %vm1072 = vcmp.eq.f32.partialorder %v1069, inf
    %v1073 = vsel %vm1072, %v1069, %v1071
    %vm1074 = vcmp.eq.f32.partialorder %v1069, 0.0
    %v1075 = vand.u32 %v1069, 2147483648
    %v1076 = vsel %vm1074, %v1075, %v1073
    %s1077 = vtos %v1076
    %s1078 = smul.f32 %s1077, 0.17677669
    %s1079 = ssub.f32 %s1078, 1.0
    %s1080 = sadd.f32 %s934, %s1048
    %s1081 = sadd.f32 %s1080, %s1079
    %v1082 = vstv %s1081
    %v1083 = vadd.f32 %v1082, 0.0
    %v1084 = vmul.f32 %v875, %v60
    %v1085 = vsel %vm576, %v1084, 0.0
    %1086 = vadd.xlane.f32.xlu0 %v1085
    %v1087 = vpop.xlane.xlu0 %1086
    %v1088 = vrsqrt.pop %v1087
    %v1089 = vmul.f32 %v1087, %v1088
    %vm1090 = vcmp.eq.f32.partialorder %v1087, inf
    %v1091 = vsel %vm1090, %v1087, %v1089
    %vm1092 = vcmp.eq.f32.partialorder %v1087, 0.0
    %v1093 = vand.u32 %v1087, 2147483648
    %v1094 = vsel %vm1092, %v1093, %v1091
    %v1095 = vadd.f32 %v1094, 1e-15
    %v1096 = vrcp.pop %v1095
    %v1097 = vmul.f32 %v732, %v1096
    %v1099 = vsel %vm576, %v1084, 0
    %1101 = vmatprep.subr.mxu0 0.0
    %1102 = vmatpush1.msra.mxu0 0.0
    %1103 = vmatprep.subr.mxu0 0.0
    %1104 = vmatpush1.msra.mxu0 0.0
    %1105 = vmatprep.subr.mxu0 0.0
    %1106 = vmatpush1.msra.mxu0 0.0
    %1107 = vmatprep.subr.mxu0 0.0
    %1108 = vmatpush1.msra.mxu0 0.0
    %1109 = vmatprep.subr.mxu0 0.0
    %1110 = vmatpush1.msra.mxu0 0.0
    %1111 = vmatprep.subr.mxu0 0.0
    %1112 = vmatpush1.msra.mxu0 0.0
    %1113 = vmatprep.subr.mxu0 0.0
    %1114 = vmatpush1.msra.mxu0 0.0
    %1115 = vmatprep.subr.mxu0 0.0
    %1116 = vmatpush1.msra.mxu0 0.0
    %1117 = vmatprep.subr.mxu0 0.0
    %1118 = vmatpush1.msra.mxu0 0.0
    %1119 = vmatprep.subr.mxu0 0.0
    %1120 = vmatpush1.msra.mxu0 0.0
    %1121 = vmatprep.subr.mxu0 0.0
    %1122 = vmatpush1.msra.mxu0 0.0
    %1123 = vmatprep.subr.mxu0 0.0
    %1124 = vmatpush1.msra.mxu0 0.0
    %1125 = vmatprep.subr.mxu0 0.0
    %1126 = vmatpush1.msra.mxu0 0.0
    %1127 = vmatprep.subr.mxu0 0.0
    %1128 = vmatpush1.msra.mxu0 0.0
    %1129 = vmatprep.subr.mxu0 0.0
    %1130 = vmatpush1.msra.mxu0 0.0
    %1131 = vmatprep.subr.mxu0 0.0
    %1132 = vmatpush1.msra.mxu0 %v1097
    %1133 = vmatprep.subr.mxu0 0.0
    %1134 = vmatpush2.msra.mxu0 0.0
    %1135 = vmatprep.subr.mxu0 0.0
    %1136 = vmatpush2.msra.mxu0 0.0
    %1137 = vmatprep.subr.mxu0 0.0
    %1138 = vmatpush2.msra.mxu0 0.0
    %1139 = vmatprep.subr.mxu0 0.0
    %1140 = vmatpush2.msra.mxu0 0.0
    %1141 = vmatprep.subr.mxu0 0.0
    %1142 = vmatpush2.msra.mxu0 0.0
    %1143 = vmatprep.subr.mxu0 0.0
    %1144 = vmatpush2.msra.mxu0 0.0
    %1145 = vmatprep.subr.mxu0 0.0
    %1146 = vmatpush2.msra.mxu0 0.0
    %1147 = vmatprep.subr.mxu0 0.0
    %1148 = vmatpush2.msra.mxu0 0.0
    %1149 = vmatprep.subr.mxu0 0.0
    %1150 = vmatpush2.msra.mxu0 0.0
    %1151 = vmatprep.subr.mxu0 0.0
    %1152 = vmatpush2.msra.mxu0 0.0
    %1153 = vmatprep.subr.mxu0 0.0
    %1154 = vmatpush2.msra.mxu0 0.0
    %1155 = vmatprep.subr.mxu0 0.0
    %1156 = vmatpush2.msra.mxu0 0.0
    %1157 = vmatprep.subr.mxu0 0.0
    %1158 = vmatpush2.msra.mxu0 0.0
    %1159 = vmatprep.subr.mxu0 0.0
    %1160 = vmatpush2.msra.mxu0 0.0
    %1161 = vmatprep.subr.mxu0 0.0
    %1162 = vmatpush2.msra.mxu0 0.0
    %1163 = vmatprep.subr.mxu0 0.0
    %1164 = vmatpush2.msra.mxu0 0.0
    %1165 = vmatprep.mubr.f32.mxu0 0.0
    %1166 = vmatmul.mubr.f32.gmra.mxu0 %v1099
    %v1167 = vpop.f32.mrf.mxu0
    %v1168 = vadd.f32 0.0, %v1167
    %v1169 = vpop.f32.mrf.mxu0
    %1170 = vdwg.mxu0
    %v1171 = vmul.f32 %v1096, %v1168
    %1172 = vxpose.xlu0.b32.start [1/16] %v619, 128
    %1173 = vxpose.xlu0.b32.cont [2/16] %v620, 128
    %1174 = vxpose.xlu0.b32.cont [3/16] 0.0, 128
    %1175 = vxpose.xlu0.b32.cont [4/16] 0.0, 128
    %1176 = vxpose.xlu0.b32.cont [5/16] 0.0, 128
    %1177 = vxpose.xlu0.b32.cont [6/16] 0.0, 128
    %1178 = vxpose.xlu0.b32.cont [7/16] 0.0, 128
    %1179 = vxpose.xlu0.b32.cont [8/16] 0.0, 128
    %1180 = vxpose.xlu0.b32.cont [9/16] 0.0, 128
    %1181 = vxpose.xlu0.b32.cont [10/16] 0.0, 128
    %1182 = vxpose.xlu0.b32.cont [11/16] 0.0, 128
    %1183 = vxpose.xlu0.b32.cont [12/16] 0.0, 128
    %1184 = vxpose.xlu0.b32.cont [13/16] 0.0, 128
    %1185 = vxpose.xlu0.b32.cont [14/16] 0.0, 128
    %1186 = vxpose.xlu0.b32.cont [15/16] 0.0, 128
    %1187 = vxpose.xlu0.b32.end [16/16] 0.0, 128
    %v1188 = vpop.trf.xlu0
    %v1189 = vpop.trf.xlu0
    %v1190 = vpop.trf.xlu0
    %v1191 = vpop.trf.xlu0
    %v1192 = vpop.trf.xlu0
    %v1193 = vpop.trf.xlu0
    %v1194 = vpop.trf.xlu0
    %v1195 = vpop.trf.xlu0
    %v1196 = vpop.trf.xlu0
    %v1197 = vpop.trf.xlu0
    %v1198 = vpop.trf.xlu0
    %v1199 = vpop.trf.xlu0
    %v1200 = vpop.trf.xlu0
    %v1201 = vpop.trf.xlu0
    %v1202 = vpop.trf.xlu0
    %v1203 = vpop.trf.xlu0
    %v1205 = vsel %vm64, %v1188, 0
    %1207 = vmatprep.subr.mxu0 0.0
    %1208 = vmatpush1.msra.mxu0 0.0
    %1209 = vmatprep.subr.mxu0 0.0
    %1210 = vmatpush1.msra.mxu0 0.0
    %1211 = vmatprep.subr.mxu0 0.0
    %1212 = vmatpush1.msra.mxu0 0.0
    %1213 = vmatprep.subr.mxu0 0.0
    %1214 = vmatpush1.msra.mxu0 0.0
    %1215 = vmatprep.subr.mxu0 0.0
    %1216 = vmatpush1.msra.mxu0 0.0
    %1217 = vmatprep.subr.mxu0 0.0
    %1218 = vmatpush1.msra.mxu0 0.0
    %1219 = vmatprep.subr.mxu0 0.0
    %1220 = vmatpush1.msra.mxu0 0.0
    %1221 = vmatprep.subr.mxu0 0.0
    %1222 = vmatpush1.msra.mxu0 0.0
    %1223 = vmatprep.subr.mxu0 0.0
    %1224 = vmatpush1.msra.mxu0 0.0
    %1225 = vmatprep.subr.mxu0 0.0
    %1226 = vmatpush1.msra.mxu0 0.0
    %1227 = vmatprep.subr.mxu0 0.0
    %1228 = vmatpush1.msra.mxu0 0.0
    %1229 = vmatprep.subr.mxu0 0.0
    %1230 = vmatpush1.msra.mxu0 0.0
    %1231 = vmatprep.subr.mxu0 0.0
    %1232 = vmatpush1.msra.mxu0 0.0
    %1233 = vmatprep.subr.mxu0 0.0
    %1234 = vmatpush1.msra.mxu0 0.0
    %1235 = vmatprep.subr.mxu0 0.0
    %1236 = vmatpush1.msra.mxu0 %v372
    %1237 = vmatprep.subr.mxu0 0.0
    %1238 = vmatpush1.msra.mxu0 %v371
    %1239 = vmatprep.subr.mxu0 0.0
    %1240 = vmatpush2.msra.mxu0 0.0
    %1241 = vmatprep.subr.mxu0 0.0
    %1242 = vmatpush2.msra.mxu0 0.0
    %1243 = vmatprep.subr.mxu0 0.0
    %1244 = vmatpush2.msra.mxu0 0.0
    %1245 = vmatprep.subr.mxu0 0.0
    %1246 = vmatpush2.msra.mxu0 0.0
    %1247 = vmatprep.subr.mxu0 0.0
    %1248 = vmatpush2.msra.mxu0 0.0
    %1249 = vmatprep.subr.mxu0 0.0
    %1250 = vmatpush2.msra.mxu0 0.0
    %1251 = vmatprep.subr.mxu0 0.0
    %1252 = vmatpush2.msra.mxu0 0.0
    %1253 = vmatprep.subr.mxu0 0.0
    %1254 = vmatpush2.msra.mxu0 0.0
    %1255 = vmatprep.subr.mxu0 0.0
    %1256 = vmatpush2.msra.mxu0 0.0
    %1257 = vmatprep.subr.mxu0 0.0
    %1258 = vmatpush2.msra.mxu0 0.0
    %1259 = vmatprep.subr.mxu0 0.0
    %1260 = vmatpush2.msra.mxu0 0.0
    %1261 = vmatprep.subr.mxu0 0.0
    %1262 = vmatpush2.msra.mxu0 0.0
    %1263 = vmatprep.subr.mxu0 0.0
    %1264 = vmatpush2.msra.mxu0 0.0
    %1265 = vmatprep.subr.mxu0 0.0
    %1266 = vmatpush2.msra.mxu0 0.0
    %1267 = vmatprep.subr.mxu0 0.0
    %1268 = vmatpush2.msra.mxu0 0.0
    %1269 = vmatprep.subr.mxu0 0.0
    %1270 = vmatpush2.msra.mxu0 0.0
    %1271 = vmatprep.mubr.f32.mxu0 0.0
    %1272 = vmatmul.mubr.f32.gmra.mxu0 %v1205
    %v1273 = vpop.f32.mrf.mxu0
    %v1274 = vadd.f32 0.0, %v1273
    %v1275 = vpop.f32.mrf.mxu0
    %1276 = vdwg.mxu0
    %vm1277 = vcmp.gt.f32.partialorder %v1274, 0.0
    %v1278 = vmul.f32 %v1274, 1.442695
    %v1279 = vpow.pop %v1278
    %v1280 = vsub.f32 %v1279, 1.0
    %v1281 = vmul.f32 %v1280, 1.6732632
    %v1282 = vsel %vm1277, %v1274, %v1281
    %v1283 = vmul.f32 %v1282, 1.050701
    %1284 = vmatprep.subr.mxu0 0.0
    %1285 = vmatpush1.msra.mxu0 0.0
    %1286 = vmatprep.subr.mxu0 0.0
    %1287 = vmatpush1.msra.mxu0 0.0
    %1288 = vmatprep.subr.mxu0 0.0
    %1289 = vmatpush1.msra.mxu0 0.0
    %1290 = vmatprep.subr.mxu0 0.0
    %1291 = vmatpush1.msra.mxu0 0.0
    %1292 = vmatprep.subr.mxu0 0.0
    %1293 = vmatpush1.msra.mxu0 0.0
    %1294 = vmatprep.subr.mxu0 0.0
    %1295 = vmatpush1.msra.mxu0 0.0
    %1296 = vmatprep.subr.mxu0 0.0
    %1297 = vmatpush1.msra.mxu0 0.0
    %1298 = vmatprep.subr.mxu0 0.0
    %1299 = vmatpush1.msra.mxu0 0.0
    %1300 = vmatprep.subr.mxu0 0.0
    %1301 = vmatpush1.msra.mxu0 0.0
    %1302 = vmatprep.subr.mxu0 0.0
    %1303 = vmatpush1.msra.mxu0 0.0
    %1304 = vmatprep.subr.mxu0 0.0
    %1305 = vmatpush1.msra.mxu0 0.0
    %1306 = vmatprep.subr.mxu0 0.0
    %1307 = vmatpush1.msra.mxu0 0.0
    %1308 = vmatprep.subr.mxu0 0.0
    %1309 = vmatpush1.msra.mxu0 0.0
    %1310 = vmatprep.subr.mxu0 0.0
    %1311 = vmatpush1.msra.mxu0 0.0
    %1312 = vmatprep.subr.mxu0 0.0
    %1313 = vmatpush1.msra.mxu0 %v620
    %1314 = vmatprep.subr.mxu0 0.0
    %1315 = vmatpush1.msra.mxu0 %v619
    %1316 = vmatprep.subr.mxu0 0.0
    %1317 = vmatpush2.msra.mxu0 0.0
    %1318 = vmatprep.subr.mxu0 0.0
    %1319 = vmatpush2.msra.mxu0 0.0
    %1320 = vmatprep.subr.mxu0 0.0
    %1321 = vmatpush2.msra.mxu0 0.0
    %1322 = vmatprep.subr.mxu0 0.0
    %1323 = vmatpush2.msra.mxu0 0.0
    %1324 = vmatprep.subr.mxu0 0.0
    %1325 = vmatpush2.msra.mxu0 0.0
    %1326 = vmatprep.subr.mxu0 0.0
    %1327 = vmatpush2.msra.mxu0 0.0
    %1328 = vmatprep.subr.mxu0 0.0
    %1329 = vmatpush2.msra.mxu0 0.0
    %1330 = vmatprep.subr.mxu0 0.0
    %1331 = vmatpush2.msra.mxu0 0.0
    %1332 = vmatprep.subr.mxu0 0.0
    %1333 = vmatpush2.msra.mxu0 0.0
    %1334 = vmatprep.subr.mxu0 0.0
    %1335 = vmatpush2.msra.mxu0 0.0
    %1336 = vmatprep.subr.mxu0 0.0
    %1337 = vmatpush2.msra.mxu0 0.0
    %1338 = vmatprep.subr.mxu0 0.0
    %1339 = vmatpush2.msra.mxu0 0.0
    %1340 = vmatprep.subr.mxu0 0.0
    %1341 = vmatpush2.msra.mxu0 0.0
    %1342 = vmatprep.subr.mxu0 0.0
    %1343 = vmatpush2.msra.mxu0 0.0
    %1344 = vmatprep.subr.mxu0 0.0
    %1345 = vmatpush2.msra.mxu0 0.0
    %1346 = vmatprep.subr.mxu0 0.0
    %1347 = vmatpush2.msra.mxu0 0.0
    %1348 = vmatprep.mubr.f32.mxu0 0.0
    %1349 = vmatmul.mubr.f32.gmra.mxu0 %v181
    %v1350 = vpop.f32.mrf.mxu0
    %v1351 = vadd.f32 0.0, %v1350
    %v1352 = vpop.f32.mrf.mxu0
    %1353 = vmatprep.mubr.f32.mxu0 0.0
    %1354 = vmatmul.mubr.f32.gmra.mxu0 %v184
    %v1355 = vpop.f32.mrf.mxu0
    %v1356 = vadd.f32 0.0, %v1355
    %v1357 = vpop.f32.mrf.mxu0
    %1358 = vdwg.mxu0
    %1359 = vmatprep.subr.mxu0 0.0
    %1360 = vmatpush1.msra.mxu0 0.0
    %1361 = vmatprep.subr.mxu0 0.0
    %1362 = vmatpush1.msra.mxu0 0.0
    %1363 = vmatprep.subr.mxu0 0.0
    %1364 = vmatpush1.msra.mxu0 0.0
    %1365 = vmatprep.subr.mxu0 0.0
    %1366 = vmatpush1.msra.mxu0 0.0
    %1367 = vmatprep.subr.mxu0 0.0
    %1368 = vmatpush1.msra.mxu0 0.0
    %1369 = vmatprep.subr.mxu0 0.0
    %1370 = vmatpush1.msra.mxu0 0.0
    %1371 = vmatprep.subr.mxu0 0.0
    %1372 = vmatpush1.msra.mxu0 0.0
    %1373 = vmatprep.subr.mxu0 0.0
    %1374 = vmatpush1.msra.mxu0 0.0
    %1375 = vmatprep.subr.mxu0 0.0
    %1376 = vmatpush1.msra.mxu0 0.0
    %1377 = vmatprep.subr.mxu0 0.0
    %1378 = vmatpush1.msra.mxu0 0.0
    %1379 = vmatprep.subr.mxu0 0.0
    %1380 = vmatpush1.msra.mxu0 0.0
    %1381 = vmatprep.subr.mxu0 0.0
    %1382 = vmatpush1.msra.mxu0 0.0
    %1383 = vmatprep.subr.mxu0 0.0
    %1384 = vmatpush1.msra.mxu0 0.0
    %1385 = vmatprep.subr.mxu0 0.0
    %1386 = vmatpush1.msra.mxu0 0.0
    %1387 = vmatprep.subr.mxu0 0.0
    %1388 = vmatpush1.msra.mxu0 %v1356
    %1389 = vmatprep.subr.mxu0 0.0
    %1390 = vmatpush1.msra.mxu0 %v1351
    %1391 = vmatprep.subr.mxu0 0.0
    %1392 = vmatpush2.msra.mxu0 0.0
    %1393 = vmatprep.subr.mxu0 0.0
    %1394 = vmatpush2.msra.mxu0 0.0
    %1395 = vmatprep.subr.mxu0 0.0
    %1396 = vmatpush2.msra.mxu0 0.0
    %1397 = vmatprep.subr.mxu0 0.0
    %1398 = vmatpush2.msra.mxu0 0.0
    %1399 = vmatprep.subr.mxu0 0.0
    %1400 = vmatpush2.msra.mxu0 0.0
    %1401 = vmatprep.subr.mxu0 0.0
    %1402 = vmatpush2.msra.mxu0 0.0
    %1403 = vmatprep.subr.mxu0 0.0
    %1404 = vmatpush2.msra.mxu0 0.0
    %1405 = vmatprep.subr.mxu0 0.0
    %1406 = vmatpush2.msra.mxu0 0.0
    %1407 = vmatprep.subr.mxu0 0.0
    %1408 = vmatpush2.msra.mxu0 0.0
    %1409 = vmatprep.subr.mxu0 0.0
    %1410 = vmatpush2.msra.mxu0 0.0
    %1411 = vmatprep.subr.mxu0 0.0
    %1412 = vmatpush2.msra.mxu0 0.0
    %1413 = vmatprep.subr.mxu0 0.0
    %1414 = vmatpush2.msra.mxu0 0.0
    %1415 = vmatprep.subr.mxu0 0.0
    %1416 = vmatpush2.msra.mxu0 0.0
    %1417 = vmatprep.subr.mxu0 0.0
    %1418 = vmatpush2.msra.mxu0 0.0
    %1419 = vmatprep.subr.mxu0 0.0
    %1420 = vmatpush2.msra.mxu0 0.0
    %1421 = vmatprep.subr.mxu0 0.0
    %1422 = vmatpush2.msra.mxu0 0.0
    %1423 = vmatprep.mubr.f32.mxu0 0.0
    %1424 = vmatmul.mubr.f32.gmra.mxu0 %v1205
    %v1425 = vpop.f32.mrf.mxu0
    %v1426 = vadd.f32 0.0, %v1425
    %v1427 = vpop.f32.mrf.mxu0
    %1428 = vdwg.mxu0
    %v1429 = vsel %vm878, %v167, 0.0
    %v1430 = vsel %vm878, %v170, 0.0
    %v1431 = vadd.f32 %v1429, %v1430
    %1432 = vadd.xlane.f32.xlu0 %v1431
    %v1433 = vpop.xlane.xlu0 %1432
    %v1434 = vrot.slane %v1433, 4
    %v1435 = vadd.f32 %v1433, %v1434
    %v1436 = vrot.slane %v1435, 2
    %v1437 = vadd.f32 %v1435, %v1436
    %v1438 = vrot.slane %v1437, 1
    %v1439 = vadd.f32 %v1437, %v1438
    %s1440 = vtos %v1439
    %v1441 = vmul.f32 %v167, %v619
    %v1442 = vmul.f32 %v170, %v620
    %v1443 = vsel %vm576, %v1441, 0.0
    %v1444 = vsel %vm576, %v1442, 0.0
    %v1445 = vadd.f32 %v1443, %v1444
    %v1446 = vrot.slane %v1445, 4
    %v1447 = vadd.f32 %v1445, %v1446
    %v1448 = vrot.slane %v1447, 2
    %v1449 = vadd.f32 %v1447, %v1448
    %v1450 = vrot.slane %v1449, 1
    %v1451 = vadd.f32 %v1449, %v1450
    %v1452 = vmul.f32 %v1426, %v59
    %v1453 = vsel %vm576, %v1452, 0.0
    %1454 = vadd.xlane.f32.xlu0 %v1453
    %v1455 = vpop.xlane.xlu0 %1454
    %v1456 = vrot.slane %v1455, 4
    %v1457 = vadd.f32 %v1455, %v1456
    %v1458 = vrot.slane %v1457, 2
    %v1459 = vadd.f32 %v1457, %v1458
    %v1460 = vrot.slane %v1459, 1
    %v1461 = vadd.f32 %v1459, %v1460
    %s1462 = vtos %v1461
    %v1463 = vmul.f32 %v1451, %v1451
    %v1464 = vsel %vm914, %v1463, 0.0
    %1465 = vadd.xlane.f32.xlu0 %v1464
    %v1466 = vpop.xlane.xlu0 %1465
    %v1467 = vrot.slane %v1466, 4
    %v1468 = vadd.f32 %v1466, %v1467
    %v1469 = vrot.slane %v1468, 2
    %v1470 = vadd.f32 %v1468, %v1469
    %v1471 = vrot.slane %v1470, 1
    %v1472 = vadd.f32 %v1470, %v1471
    %s1473 = vtos %v1472
    %v1474 = vstv %s1440
    %v1475 = vrcp.pop %v1474
    %s1476 = vtos %v1475
    %s1477 = smul.f32 %s1473, %s1476
    %s1478 = ssub.f32 %s1462, %s1477
    %s1479 = ssub.f32 0.0, %s1478
    %v1480 = vstv %s1440
    %v1481 = vrcp.pop %v1480
    %s1482 = vtos %v1481
    %s1483 = smul.f32 %s1479, %s1482
    %1484 = vmatprep.subr.mxu0 0.0
    %1485 = vmatpush1.msra.mxu0 0.0
    %1486 = vmatprep.subr.mxu0 0.0
    %1487 = vmatpush1.msra.mxu0 0.0
    %1488 = vmatprep.subr.mxu0 0.0
    %1489 = vmatpush1.msra.mxu0 0.0
    %1490 = vmatprep.subr.mxu0 0.0
    %1491 = vmatpush1.msra.mxu0 0.0
    %1492 = vmatprep.subr.mxu0 0.0
    %1493 = vmatpush1.msra.mxu0 0.0
    %1494 = vmatprep.subr.mxu0 0.0
    %1495 = vmatpush1.msra.mxu0 0.0
    %1496 = vmatprep.subr.mxu0 0.0
    %1497 = vmatpush1.msra.mxu0 0.0
    %1498 = vmatprep.subr.mxu0 0.0
    %1499 = vmatpush1.msra.mxu0 0.0
    %1500 = vmatprep.subr.mxu0 0.0
    %1501 = vmatpush1.msra.mxu0 0.0
    %1502 = vmatprep.subr.mxu0 0.0
    %1503 = vmatpush1.msra.mxu0 0.0
    %1504 = vmatprep.subr.mxu0 0.0
    %1505 = vmatpush1.msra.mxu0 0.0
    %1506 = vmatprep.subr.mxu0 0.0
    %1507 = vmatpush1.msra.mxu0 0.0
    %1508 = vmatprep.subr.mxu0 0.0
    %1509 = vmatpush1.msra.mxu0 0.0
    %1510 = vmatprep.subr.mxu0 0.0
    %1511 = vmatpush1.msra.mxu0 0.0
    %1512 = vmatprep.subr.mxu0 0.0
    %1513 = vmatpush1.msra.mxu0 %v620
    %1514 = vmatprep.subr.mxu0 0.0
    %1515 = vmatpush1.msra.mxu0 %v619
    %1516 = vmatprep.subr.mxu0 0.0
    %1517 = vmatpush2.msra.mxu0 0.0
    %1518 = vmatprep.subr.mxu0 0.0
    %1519 = vmatpush2.msra.mxu0 0.0
    %1520 = vmatprep.subr.mxu0 0.0
    %1521 = vmatpush2.msra.mxu0 0.0
    %1522 = vmatprep.subr.mxu0 0.0
    %1523 = vmatpush2.msra.mxu0 0.0
    %1524 = vmatprep.subr.mxu0 0.0
    %1525 = vmatpush2.msra.mxu0 0.0
    %1526 = vmatprep.subr.mxu0 0.0
    %1527 = vmatpush2.msra.mxu0 0.0
    %1528 = vmatprep.subr.mxu0 0.0
    %1529 = vmatpush2.msra.mxu0 0.0
    %1530 = vmatprep.subr.mxu0 0.0
    %1531 = vmatpush2.msra.mxu0 0.0
    %1532 = vmatprep.subr.mxu0 0.0
    %1533 = vmatpush2.msra.mxu0 0.0
    %1534 = vmatprep.subr.mxu0 0.0
    %1535 = vmatpush2.msra.mxu0 0.0
    %1536 = vmatprep.subr.mxu0 0.0
    %1537 = vmatpush2.msra.mxu0 0.0
    %1538 = vmatprep.subr.mxu0 0.0
    %1539 = vmatpush2.msra.mxu0 0.0
    %1540 = vmatprep.subr.mxu0 0.0
    %1541 = vmatpush2.msra.mxu0 0.0
    %1542 = vmatprep.subr.mxu0 0.0
    %1543 = vmatpush2.msra.mxu0 0.0
    %1544 = vmatprep.subr.mxu0 0.0
    %1545 = vmatpush2.msra.mxu0 0.0
    %1546 = vmatprep.subr.mxu0 0.0
    %1547 = vmatpush2.msra.mxu0 0.0
    %1548 = vmatprep.mubr.f32.mxu0 0.0
    %1549 = vmatmul.mubr.f32.gmra.mxu0 %v1205
    %v1550 = vpop.f32.mrf.mxu0
    %v1551 = vadd.f32 0.0, %v1550
    %v1552 = vpop.f32.mrf.mxu0
    %1553 = vdwg.mxu0
    %v1554 = vmul.f32 %v1551, %v1551
    %v1555 = vsel %vm576, %v1554, 0.0
    %1556 = vadd.xlane.f32.xlu0 %v1555
    %v1557 = vpop.xlane.xlu0 %1556
    %v1558 = vrot.slane %v1557, 4
    %v1559 = vadd.f32 %v1557, %v1558
    %v1560 = vrot.slane %v1559, 2
    %v1561 = vadd.f32 %v1559, %v1560
    %v1562 = vrot.slane %v1561, 1
    %v1563 = vadd.f32 %v1561, %v1562
    %s1564 = vtos %v1563
    %v1565 = vstv %s1564
    %v1566 = vrsqrt.pop %v1565
    %v1567 = vmul.f32 %v1565, %v1566
    %vm1568 = vcmp.eq.f32.partialorder %v1565, inf
    %v1569 = vsel %vm1568, %v1565, %v1567
    %vm1570 = vcmp.eq.f32.partialorder %v1565, 0.0
    %v1571 = vand.u32 %v1565, 2147483648
    %v1572 = vsel %vm1570, %v1571, %v1569
    %s1573 = vtos %v1572
    %v1574 = vstv %s1573
    %v1575 = vrcp.pop %v1574
    %v1576 = vmul.f32 %v1551, %v1575
    %v1577 = vsub.f32 %v1576, %v61
    %v1578 = vmul.f32 %v1577, %v1577
    %v1579 = vsel %vm576, %v1578, 0.0
    %1580 = vadd.xlane.f32.xlu0 %v1579
    %v1581 = vpop.xlane.xlu0 %1580
    %v1582 = vrot.slane %v1581, 4
    %v1583 = vadd.f32 %v1581, %v1582
    %v1584 = vrot.slane %v1583, 2
    %v1585 = vadd.f32 %v1583, %v1584
    %v1586 = vrot.slane %v1585, 1
    %v1587 = vadd.f32 %v1585, %v1586
    %s1588 = vtos %v1587
    %v1589 = vstv %s1588
    %v1590 = vrsqrt.pop %v1589
    %v1591 = vmul.f32 %v1589, %v1590
    %vm1592 = vcmp.eq.f32.partialorder %v1589, inf
    %v1593 = vsel %vm1592, %v1589, %v1591
    %vm1594 = vcmp.eq.f32.partialorder %v1589, 0.0
    %v1595 = vand.u32 %v1589, 2147483648
    %v1596 = vsel %vm1594, %v1595, %v1593
    %s1597 = vtos %v1596
    %v1598 = vsel %vm576, %v619, 0.0
    %v1599 = vsel %vm576, %v620, 0.0
    %v1600 = vadd.f32 %v1598, %v1599
    %v1601 = vrot.slane %v1600, 4
    %v1602 = vadd.f32 %v1600, %v1601
    %v1603 = vrot.slane %v1602, 2
    %v1604 = vadd.f32 %v1602, %v1603
    %v1605 = vrot.slane %v1604, 1
    %v1606 = vadd.f32 %v1604, %v1605
    %v1607 = vmul.f32 %v1606, %v1606
    %v1608 = vsel %vm914, %v1607, 0.0
    %1609 = vadd.xlane.f32.xlu0 %v1608
    %v1610 = vpop.xlane.xlu0 %1609
    %v1611 = vrot.slane %v1610, 4
    %v1612 = vadd.f32 %v1610, %v1611
    %v1613 = vrot.slane %v1612, 2
    %v1614 = vadd.f32 %v1612, %v1613
    %v1615 = vrot.slane %v1614, 1
    %v1616 = vadd.f32 %v1614, %v1615
    %s1617 = vtos %v1616
    %v1618 = vstv %s1617
    %v1619 = vrsqrt.pop %v1618
    %v1620 = vmul.f32 %v1618, %v1619
    %vm1621 = vcmp.eq.f32.partialorder %v1618, inf
    %v1622 = vsel %vm1621, %v1618, %v1620
    %vm1623 = vcmp.eq.f32.partialorder %v1618, 0.0
    %v1624 = vand.u32 %v1618, 2147483648
    %v1625 = vsel %vm1623, %v1624, %v1622
    %s1626 = vtos %v1625
    %s1627 = smul.f32 %s1626, 0.17677669
    %s1628 = ssub.f32 %s1627, 1.0
    %s1629 = sadd.f32 %s1483, %s1597
    %s1630 = sadd.f32 %s1629, %s1628
    %v1631 = vstv %s1630
    %v1632 = vadd.f32 %v1083, %v1631
    %v1633 = vmul.f32 %v1426, %v60
    %v1634 = vsel %vm576, %v1633, 0.0
    %1635 = vadd.xlane.f32.xlu0 %v1634
    %v1636 = vpop.xlane.xlu0 %1635
    %v1637 = vrsqrt.pop %v1636
    %v1638 = vmul.f32 %v1636, %v1637
    %vm1639 = vcmp.eq.f32.partialorder %v1636, inf
    %v1640 = vsel %vm1639, %v1636, %v1638
    %vm1641 = vcmp.eq.f32.partialorder %v1636, 0.0
    %v1642 = vand.u32 %v1636, 2147483648
    %v1643 = vsel %vm1641, %v1642, %v1640
    %v1644 = vadd.f32 %v1643, 1e-15
    %v1645 = vrcp.pop %v1644
    %v1646 = vmul.f32 %v1283, %v1645
    %v1648 = vsel %vm576, %v1633, 0
    %1650 = vmatprep.subr.mxu0 0.0
    %1651 = vmatpush1.msra.mxu0 0.0
    %1652 = vmatprep.subr.mxu0 0.0
    %1653 = vmatpush1.msra.mxu0 0.0
    %1654 = vmatprep.subr.mxu0 0.0
    %1655 = vmatpush1.msra.mxu0 0.0
    %1656 = vmatprep.subr.mxu0 0.0
    %1657 = vmatpush1.msra.mxu0 0.0
    %1658 = vmatprep.subr.mxu0 0.0
    %1659 = vmatpush1.msra.mxu0 0.0
    %1660 = vmatprep.subr.mxu0 0.0
    %1661 = vmatpush1.msra.mxu0 0.0
    %1662 = vmatprep.subr.mxu0 0.0
    %1663 = vmatpush1.msra.mxu0 0.0
    %1664 = vmatprep.subr.mxu0 0.0
    %1665 = vmatpush1.msra.mxu0 0.0
    %1666 = vmatprep.subr.mxu0 0.0
    %1667 = vmatpush1.msra.mxu0 0.0
    %1668 = vmatprep.subr.mxu0 0.0
    %1669 = vmatpush1.msra.mxu0 0.0
    %1670 = vmatprep.subr.mxu0 0.0
    %1671 = vmatpush1.msra.mxu0 0.0
    %1672 = vmatprep.subr.mxu0 0.0
    %1673 = vmatpush1.msra.mxu0 0.0
    %1674 = vmatprep.subr.mxu0 0.0
    %1675 = vmatpush1.msra.mxu0 0.0
    %1676 = vmatprep.subr.mxu0 0.0
    %1677 = vmatpush1.msra.mxu0 0.0
    %1678 = vmatprep.subr.mxu0 0.0
    %1679 = vmatpush1.msra.mxu0 0.0
    %1680 = vmatprep.subr.mxu0 0.0
    %1681 = vmatpush1.msra.mxu0 %v1646
    %1682 = vmatprep.subr.mxu0 0.0
    %1683 = vmatpush2.msra.mxu0 0.0
    %1684 = vmatprep.subr.mxu0 0.0
    %1685 = vmatpush2.msra.mxu0 0.0
    %1686 = vmatprep.subr.mxu0 0.0
    %1687 = vmatpush2.msra.mxu0 0.0
    %1688 = vmatprep.subr.mxu0 0.0
    %1689 = vmatpush2.msra.mxu0 0.0
    %1690 = vmatprep.subr.mxu0 0.0
    %1691 = vmatpush2.msra.mxu0 0.0
    %1692 = vmatprep.subr.mxu0 0.0
    %1693 = vmatpush2.msra.mxu0 0.0
    %1694 = vmatprep.subr.mxu0 0.0
    %1695 = vmatpush2.msra.mxu0 0.0
    %1696 = vmatprep.subr.mxu0 0.0
    %1697 = vmatpush2.msra.mxu0 0.0
    %1698 = vmatprep.subr.mxu0 0.0
    %1699 = vmatpush2.msra.mxu0 0.0
    %1700 = vmatprep.subr.mxu0 0.0
    %1701 = vmatpush2.msra.mxu0 0.0
    %1702 = vmatprep.subr.mxu0 0.0
    %1703 = vmatpush2.msra.mxu0 0.0
    %1704 = vmatprep.subr.mxu0 0.0
    %1705 = vmatpush2.msra.mxu0 0.0
    %1706 = vmatprep.subr.mxu0 0.0
    %1707 = vmatpush2.msra.mxu0 0.0
    %1708 = vmatprep.subr.mxu0 0.0
    %1709 = vmatpush2.msra.mxu0 0.0
    %1710 = vmatprep.subr.mxu0 0.0
    %1711 = vmatpush2.msra.mxu0 0.0
    %1712 = vmatprep.subr.mxu0 0.0
    %1713 = vmatpush2.msra.mxu0 0.0
    %1714 = vmatprep.mubr.f32.mxu0 0.0
    %1715 = vmatmul.mubr.f32.gmra.mxu0 %v1648
    %v1716 = vpop.f32.mrf.mxu0
    %v1717 = vadd.f32 0.0, %v1716
    %v1718 = vpop.f32.mrf.mxu0
    %1719 = vdwg.mxu0
    %v1720 = vmul.f32 %v1645, %v1717
    %v1721 = vlaneseq
    %v1722 = vshrl.u32 %v1721, 7
    %v1723 = vsub.s32 0, %v1722
    %v1724 = vrot.slane %v52, %v1723
    %v1726 = vsel %vm377, %v1171, 0
    %v1729 = vsel %vm377, %v1720, 0
    %1731 = vmatprep.subr.mxu0 0.0
    %1732 = vmatpush1.msra.mxu0 0.0
    %1733 = vmatprep.subr.mxu0 0.0
    %1734 = vmatpush1.msra.mxu0 0.0
    %1735 = vmatprep.subr.mxu0 0.0
    %1736 = vmatpush1.msra.mxu0 0.0
    %1737 = vmatprep.subr.mxu0 0.0
    %1738 = vmatpush1.msra.mxu0 0.0
    %1739 = vmatprep.subr.mxu0 0.0
    %1740 = vmatpush1.msra.mxu0 0.0
    %1741 = vmatprep.subr.mxu0 0.0
    %1742 = vmatpush1.msra.mxu0 0.0
    %1743 = vmatprep.subr.mxu0 0.0
    %1744 = vmatpush1.msra.mxu0 0.0
    %1745 = vmatprep.subr.mxu0 0.0
    %1746 = vmatpush1.msra.mxu0 0.0
    %1747 = vmatprep.subr.mxu0 0.0
    %1748 = vmatpush1.msra.mxu0 0.0
    %1749 = vmatprep.subr.mxu0 0.0
    %1750 = vmatpush1.msra.mxu0 0.0
    %1751 = vmatprep.subr.mxu0 0.0
    %1752 = vmatpush1.msra.mxu0 0.0
    %1753 = vmatprep.subr.mxu0 0.0
    %1754 = vmatpush1.msra.mxu0 0.0
    %1755 = vmatprep.subr.mxu0 0.0
    %1756 = vmatpush1.msra.mxu0 %v44
    %1757 = vmatprep.subr.mxu0 0.0
    %1758 = vmatpush1.msra.mxu0 %v43
    %1759 = vmatprep.subr.mxu0 0.0
    %1760 = vmatpush1.msra.mxu0 %v42
    %1761 = vmatprep.subr.mxu0 0.0
    %1762 = vmatpush1.msra.mxu0 %v41
    %1763 = vmatprep.subr.mxu0 0.0
    %1764 = vmatpush2.msra.mxu0 0.0
    %1765 = vmatprep.subr.mxu0 0.0
    %1766 = vmatpush2.msra.mxu0 0.0
    %1767 = vmatprep.subr.mxu0 0.0
    %1768 = vmatpush2.msra.mxu0 0.0
    %1769 = vmatprep.subr.mxu0 0.0
    %1770 = vmatpush2.msra.mxu0 0.0
    %1771 = vmatprep.subr.mxu0 0.0
    %1772 = vmatpush2.msra.mxu0 0.0
    %1773 = vmatprep.subr.mxu0 0.0
    %1774 = vmatpush2.msra.mxu0 0.0
    %1775 = vmatprep.subr.mxu0 0.0
    %1776 = vmatpush2.msra.mxu0 0.0
    %1777 = vmatprep.subr.mxu0 0.0
    %1778 = vmatpush2.msra.mxu0 0.0
    %1779 = vmatprep.subr.mxu0 0.0
    %1780 = vmatpush2.msra.mxu0 0.0
    %1781 = vmatprep.subr.mxu0 0.0
    %1782 = vmatpush2.msra.mxu0 0.0
    %1783 = vmatprep.subr.mxu0 0.0
    %1784 = vmatpush2.msra.mxu0 0.0
    %1785 = vmatprep.subr.mxu0 0.0
    %1786 = vmatpush2.msra.mxu0 0.0
    %1787 = vmatprep.subr.mxu0 0.0
    %1788 = vmatpush2.msra.mxu0 0.0
    %1789 = vmatprep.subr.mxu0 0.0
    %1790 = vmatpush2.msra.mxu0 0.0
    %1791 = vmatprep.subr.mxu0 0.0
    %1792 = vmatpush2.msra.mxu0 0.0
    %1793 = vmatprep.subr.mxu0 0.0
    %1794 = vmatpush2.msra.mxu0 0.0
    %1795 = vmatprep.mubr.f32.mxu0 0.0
    %1796 = vmatmul.mubr.f32.gmra.mxu0 %v1726
    %v1797 = vpop.f32.mrf.mxu0
    %v1798 = vadd.f32 %v1724, %v1797
    %v1799 = vpop.f32.mrf.mxu0
    %1800 = vmatprep.mubr.f32.mxu0 0.0
    %1801 = vmatmul.mubr.f32.gmra.mxu0 %v1729
    %v1802 = vpop.f32.mrf.mxu0
    %v1803 = vadd.f32 %v1724, %v1802
    %v1804 = vpop.f32.mrf.mxu0
    %1805 = vdwg.mxu0
    %v1807 = vsel %vm377, %v732, 0
    %v1810 = vsel %vm377, %v1283, 0
    %1812 = vmatprep.subr.mxu0 0.0
    %1813 = vmatpush1.msra.mxu0 0.0
    %1814 = vmatprep.subr.mxu0 0.0
    %1815 = vmatpush1.msra.mxu0 0.0
    %1816 = vmatprep.subr.mxu0 0.0
    %1817 = vmatpush1.msra.mxu0 0.0
    %1818 = vmatprep.subr.mxu0 0.0
    %1819 = vmatpush1.msra.mxu0 0.0
    %1820 = vmatprep.subr.mxu0 0.0
    %1821 = vmatpush1.msra.mxu0 0.0
    %1822 = vmatprep.subr.mxu0 0.0
    %1823 = vmatpush1.msra.mxu0 0.0
    %1824 = vmatprep.subr.mxu0 0.0
    %1825 = vmatpush1.msra.mxu0 0.0
    %1826 = vmatprep.subr.mxu0 0.0
    %1827 = vmatpush1.msra.mxu0 0.0
    %1828 = vmatprep.subr.mxu0 0.0
    %1829 = vmatpush1.msra.mxu0 0.0
    %1830 = vmatprep.subr.mxu0 0.0
    %1831 = vmatpush1.msra.mxu0 0.0
    %1832 = vmatprep.subr.mxu0 0.0
    %1833 = vmatpush1.msra.mxu0 0.0
    %1834 = vmatprep.subr.mxu0 0.0
    %1835 = vmatpush1.msra.mxu0 0.0
    %1836 = vmatprep.subr.mxu0 0.0
    %1837 = vmatpush1.msra.mxu0 %v48
    %1838 = vmatprep.subr.mxu0 0.0
    %1839 = vmatpush1.msra.mxu0 %v47
    %1840 = vmatprep.subr.mxu0 0.0
    %1841 = vmatpush1.msra.mxu0 %v46
    %1842 = vmatprep.subr.mxu0 0.0
    %1843 = vmatpush1.msra.mxu0 %v45
    %1844 = vmatprep.subr.mxu0 0.0
    %1845 = vmatpush2.msra.mxu0 0.0
    %1846 = vmatprep.subr.mxu0 0.0
    %1847 = vmatpush2.msra.mxu0 0.0
    %1848 = vmatprep.subr.mxu0 0.0
    %1849 = vmatpush2.msra.mxu0 0.0
    %1850 = vmatprep.subr.mxu0 0.0
    %1851 = vmatpush2.msra.mxu0 0.0
    %1852 = vmatprep.subr.mxu0 0.0
    %1853 = vmatpush2.msra.mxu0 0.0
    %1854 = vmatprep.subr.mxu0 0.0
    %1855 = vmatpush2.msra.mxu0 0.0
    %1856 = vmatprep.subr.mxu0 0.0
    %1857 = vmatpush2.msra.mxu0 0.0
    %1858 = vmatprep.subr.mxu0 0.0
    %1859 = vmatpush2.msra.mxu0 0.0
    %1860 = vmatprep.subr.mxu0 0.0
    %1861 = vmatpush2.msra.mxu0 0.0
    %1862 = vmatprep.subr.mxu0 0.0
    %1863 = vmatpush2.msra.mxu0 0.0
    %1864 = vmatprep.subr.mxu0 0.0
    %1865 = vmatpush2.msra.mxu0 0.0
    %1866 = vmatprep.subr.mxu0 0.0
    %1867 = vmatpush2.msra.mxu0 0.0
    %1868 = vmatprep.subr.mxu0 0.0
    %1869 = vmatpush2.msra.mxu0 0.0
    %1870 = vmatprep.subr.mxu0 0.0
    %1871 = vmatpush2.msra.mxu0 0.0
    %1872 = vmatprep.subr.mxu0 0.0
    %1873 = vmatpush2.msra.mxu0 0.0
    %1874 = vmatprep.subr.mxu0 0.0
    %1875 = vmatpush2.msra.mxu0 0.0
    %1876 = vmatprep.mubr.f32.mxu0 0.0
    %1877 = vmatmul.mubr.f32.gmra.mxu0 %v1807
    %v1878 = vpop.f32.mrf.mxu0
    %v1879 = vadd.f32 0.0, %v1878
    %v1880 = vpop.f32.mrf.mxu0
    %1881 = vmatprep.mubr.f32.mxu0 0.0
    %1882 = vmatmul.mubr.f32.gmra.mxu0 %v1810
    %v1883 = vpop.f32.mrf.mxu0
    %v1884 = vadd.f32 0.0, %v1883
    %v1885 = vpop.f32.mrf.mxu0
    %1886 = vdwg.mxu0
    %v1887 = vadd.f32 %v1798, %v1879
    %v1888 = vadd.f32 %v1803, %v1884
    %1889 = vst.msk [vmem:[#allocation5] sm:$0xff] %vm377, %v1887
    %s1890 = scalar_lea.vmem [#allocation5], 8
    %1891 = vst.msk [vmem:[%s1890] sm:$0xff] %vm377, %v1888
    %v1892 = vmul.f32 %v1632, 0.5
    %vm1893 = vcmask 0
    %1894 = vst.msk [vmem:[#allocation6] sm:$0x1] %vm1893, %v1892
    // Predicated region
    $region18: #{poga_forward.1} parent=1 // pred_check
      _
    $region19: #{poga_forward.1} parent=1 // pred_check_branch
      %1896 = sbr.rel (0) target = $region21
    $region20: #{poga_forward.1} parent=1 // pred_region
      %s1898 = ssub.s32 256, 256
      %1899 = vsyncadd [#allocation4], %s1898
      %s1900 = sshll.u32 [#allocation5], 4
      %s1901 = int_to_ptr.vmem [resolvable:$true] %s1900
      %1906 = dma.vmem_to_hbm [thread:$0]  %s1901, 256, %s3, [#allocation4], 128, 128, 8
    $region21: #{poga_forward.1} parent=1 // pred_fallthru
      _
    // Predicated region
    $region22: #{poga_forward.1} parent=1 // pred_check
      _
    $region23: #{poga_forward.1} parent=1 // pred_check_branch
      %1908 = sbr.rel (0) target = $region25
    $region24: #{poga_forward.1} parent=1 // pred_region
      %s1910 = ssub.s32 16, 16
      %1911 = vsyncadd [#allocation7], %s1910
      %s1913 = sshll.u32 [#allocation6], 4
      %s1914 = int_to_ptr.vmem [resolvable:$true] %s1913
      %1916 = dma.vmem_to_hbm [thread:$0]  %s1914, 16, %s4, [#allocation7]
    $region25: #{poga_forward.1} parent=1 // pred_fallthru
      _
    // Predicated region
    $region26: #{poga_forward.1} parent=1 // pred_check
      _
    $region27: #{poga_forward.1} parent=1 // pred_check_branch
      %1918 = sbr.rel (0) target = $region29
    $region28: #{poga_forward.1} parent=1 // pred_region
      %1919 = dma.done [#allocation4], 256
    $region29: #{poga_forward.1} parent=1 // pred_fallthru
      _
    // Predicated region
    $region30: #{poga_forward.1} parent=1 // pred_check
      _
    $region31: #{poga_forward.1} parent=1 // pred_check_branch
      %1921 = sbr.rel (0) target = $region33
    $region32: #{poga_forward.1} parent=1 // pred_region
      %1922 = dma.done [#allocation7], 16
    $region33: #{poga_forward.1} parent=1 // pred_fallthru
      _
    %1923 = vsyncpa [#allocation3], 1
    %1924 = vsyncpa [#allocation4], 1
    %1925 = vsyncpa [#allocation7], 1

</llo_original>
